<compile_context>
chip_gen: v7x
topology: tpu7x:2x2x1
jax: 0.10.0
libtpu: 0.0.40
codegen_flags: <defaults>
</compile_context>

<pallas_src>
import jax
import jax.numpy as jnp
from jax import lax
from jax.experimental import pallas as pl
from jax.experimental.pallas import tpu as pltpu
import numpy as np


def _fold_kernel(x_ref, ah_ref, awt_ref, o_ref):
    # x_ref  : (Gb, ps, ps, nh, nw)  native patch layout (group, ph, pw, n1, n2)
    # ah_ref : (ps, th, nh)          count-normalized + cropped H-fold, per ph
    # awt_ref: (ps, nw, wc)          count-normalized + cropped W-fold^T, per pw
    # o_ref  : (Gb, th, wc)          final (normalized, cropped) images
    gb = x_ref.shape[0]
    ps = x_ref.shape[1]
    nh = x_ref.shape[3]
    wc = awt_ref.shape[2]

    def one_group(i, carry):
        acc = jnp.zeros(o_ref.shape[1:], jnp.float32)          # (th, wc)
        for ph in range(ps):                                   # static unroll
            tw = jnp.zeros((nh, wc), jnp.float32)
            for pw in range(ps):                               # static unroll
                # (nh, nw) @ (nw, wc) -> (nh, wc)   W-fold for this (ph, pw)
                tw = tw + jnp.dot(x_ref[i, ph, pw], awt_ref[pw],
                                  preferred_element_type=jnp.float32)
            # (th, nh) @ (nh, wc) -> (th, wc)       H-fold, once per ph
            acc = acc + jnp.dot(ah_ref[ph], tw,
                                preferred_element_type=jnp.float32)
        o_ref[i] = acc.astype(o_ref.dtype)
        return carry

    lax.fori_loop(0, gb, one_group, 0)


def _make_fold_matrix(out_size, ps, n, stride):
    # A[y, ph*n + k] = 1  iff  k*stride + ph == y   (columns ordered (ph, k))
    ph = jnp.arange(ps)
    k = jnp.arange(n)
    pos = (k[None, :] * stride + ph[:, None]).reshape(-1)      # (ps*n,)
    return (jnp.arange(out_size)[:, None] == pos[None, :]).astype(jnp.float32)


def _round_up(x, m):
    return ((x + m - 1) // m) * m


def patch2im_pallas(x_patch, patchsize, stride, padding):
    padtop, padbottom, padleft, padright = padding
    t, c, ps0, ps1, nh, nw = x_patch.shape
    ps = patchsize
    assert ps0 == ps and ps1 == ps
    h = (nh - 1) * stride + ps
    w = (nw - 1) * stride + ps
    hc = h - padtop - padbottom
    wc = w - padleft - padright
    m = t * c
    orig_dtype = x_patch.dtype

    # Native layout in / native layout out: metadata-only reshape, no HBM copy.
    xg = x_patch.reshape(m, ps, ps, nh, nw)
    if xg.dtype != jnp.float32:
        xg = xg.astype(jnp.float32)   # only pay a cast if input isn't f32

    # Tiny grid-invariant fold matrices with 1/count and the crop baked in.
    #   img / counts == sum_{ph,pw} (Ah_ph/count_h) @ x[ph,pw] @ (AwT_pw/count_w)
    a_h = _make_fold_matrix(h, ps, nh, stride)                      # (h, ps*nh)
    a_w = _make_fold_matrix(w, ps, nw, stride)                      # (w, ps*nw)
    cnt_h = jnp.maximum(jnp.sum(a_h, axis=1, keepdims=True), 1.0)   # 0/0 guard
    cnt_w = jnp.maximum(jnp.sum(a_w, axis=1, keepdims=True), 1.0)
    ah = (a_h / cnt_h)[padtop:h - padbottom]                        # (hc, ps*nh)
    aw = (a_w / cnt_w)[padleft:w - padright]                        # (wc, ps*nw)
    ah_stack = ah.reshape(hc, ps, nh).transpose(1, 0, 2)            # (ps, hc, nh)
    awt_stack = aw.reshape(wc, ps, nw).transpose(1, 2, 0)           # (ps, nw, wc)

    # ---- tile selection (VMEM-aware; MB-scale per-step traffic) ----
    def vmem_bytes(gb_, th_):
        # element counts with (8, 128) tile padding, double-buffered, f32
        x_blk = gb_ * ps * ps * _round_up(nh, 8) * _round_up(nw, 128)
        ah_blk = ps * _round_up(th_, 8) * _round_up(nh, 128)
        awt_blk = ps * _round_up(nw, 8) * _round_up(wc, 128)
        o_blk = gb_ * _round_up(th_, 8) * _round_up(wc, 128)
        return 2 * 4 * (x_blk + ah_blk + awt_blk + o_blk)

    budget = 40 * 1024 * 1024                 # conservative: fits v7x 64 MiB
    per_group = ps * ps * _round_up(nh, 8) * _round_up(nw, 128) * 4
    gb = max(1, min(m, (2 * 1024 * 1024) // max(per_group, 1)))
    th = hc
    while vmem_bytes(gb, th) > budget and gb > 1:
        gb = max(1, gb // 2)
    while vmem_bytes(gb, th) > budget and th > 8:
        th = _round_up(max(8, th // 2), 8)    # tiled h-blocks must be 8-aligned

    grid = (pl.cdiv(m, gb), pl.cdiv(hc, th))

    cost = pl.CostEstimate(
        flops=2 * m * (ps * ps * nh * nw * wc + ps * hc * nh * wc),
        transcendentals=0,
        bytes_accessed=4 * (m * ps * ps * nh * nw + m * hc * wc
                            + ps * hc * nh + ps * nw * wc),
    )

    out = pl.pallas_call(
        _fold_kernel,
        out_shape=jax.ShapeDtypeStruct((m, hc, wc), jnp.float32),
        grid_spec=pltpu.PrefetchScalarGridSpec(
            num_scalar_prefetch=0,
            grid=grid,
            in_specs=[
                # x: only the group axis is tiled; block is re-used across
                # h-tiles (inner grid axis) so it is DMA'd once per group.
                pl.BlockSpec((gb, ps, ps, nh, nw),
                             lambda g, j: (g, 0, 0, 0, 0)),
                # A_h: tiled over h; fully resident when Ht == 1.
                pl.BlockSpec((ps, th, nh), lambda g, j: (0, j, 0)),
                # A_w^T: grid-invariant, stays resident.
                pl.BlockSpec((ps, nw, wc), lambda g, j: (0, 0, 0)),
            ],
            out_specs=pl.BlockSpec((gb, th, wc), lambda g, j: (g, j, 0)),
        ),
        compiler_params=pltpu.CompilerParams(
            dimension_semantics=("parallel", "parallel"),
            vmem_limit_bytes=min(56 * 1024 * 1024,
                                 max(32 * 1024 * 1024,
                                     2 * vmem_bytes(gb, th))),
        ),
        cost_estimate=cost,
    )(xg, ah_stack, awt_stack)

    # free reshape back to (t, c, h_crop, w_crop)
    return out.reshape(t, c, hc, wc).astype(orig_dtype)


def patch2im_reference(x_patch, patchsize, stride, padding):
    # independent scatter-add reference in numpy
    padtop, padbottom, padleft, padright = padding
    t, c, ps, _, nh, nw = x_patch.shape
    h = (nh - 1) * stride + ps
    w = (nw - 1) * stride + ps
    acc = np.zeros((t, c, h, w), dtype=np.float64)
    cnt = np.zeros((t, c, h, w), dtype=np.float64)
    xp = np.asarray(x_patch, dtype=np.float64)
    for n1 in range(nh):
        for n2 in range(nw):
            y0, x0 = n1 * stride, n2 * stride
            acc[:, :, y0:y0 + ps, x0:x0 + ps] += xp[:, :, :, :, n1, n2]
            cnt[:, :, y0:y0 + ps, x0:x0 + ps] += 1.0
    out = acc / cnt
    return out[:, :, padtop:h - padbottom, padleft:w - padright]


if __name__ == "__main__":
    patchsize = 4
    stride = 2
    padding = (1, 1, 1, 1)   # (padtop, padbottom, padleft, padright)

    t, c, nh, nw = 2, 4, 7, 7
    key = jax.random.PRNGKey(0)
    x_patch = jax.random.normal(key, (t, c, patchsize, patchsize, nh, nw),
                                dtype=jnp.float32)

    fn = jax.jit(patch2im_pallas, static_argnums=(1, 2, 3))
    out = jax.block_until_ready(fn(x_patch, patchsize, stride, padding))

    ref = patch2im_reference(np.asarray(x_patch), patchsize, stride, padding)
    assert out.shape == ref.shape, (out.shape, ref.shape)
    np.testing.assert_allclose(np.asarray(out), ref, rtol=1e-5, atol=1e-5)

    print("KERNEL_OK")
</pallas_src>

<mosaic_0001>
module attributes {stable_mosaic.version = 11 : i64} {
  func.func @_fold_kernel(%arg0: i32, %arg1: i32, %arg2: memref<8x4x4x7x7xf32, #tpu.memory_space<vmem>>, %arg3: memref<4x14x7xf32, #tpu.memory_space<vmem>>, %arg4: memref<4x7x14xf32, #tpu.memory_space<vmem>>, %arg5: memref<8x14x14xf32, #tpu.memory_space<vmem>>) attributes {dimension_semantics = [#tpu.dimension_semantics<parallel>, #tpu.dimension_semantics<parallel>], iteration_bounds = array<i64: 1, 1>, scalar_prefetch = 0 : i64, scratch_operands = 0 : i64, tpu.core_type = #tpu.core_type<tc>, window_params = [{transform_indices = @transform_0, window_bounds = array<i64: 8, 4, 4, 7, 7>}, {transform_indices = @transform_1, window_bounds = array<i64: 4, 14, 7>}, {pipeline_mode = #tpu.pipeline_mode<synchronous>, transform_indices = @transform_2, window_bounds = array<i64: 4, 7, 14>}, {transform_indices = @transform_3, window_bounds = array<i64: 8, 14, 14>}]} {
    %c0_i32 = arith.constant 0 : i32
    %c8_i32 = arith.constant 8 : i32
    %0 = arith.addi %c0_i32, %c8_i32 : i32
    %c1_i32 = arith.constant 1 : i32
    scf.for %arg6 = %c0_i32 to %0 step %c1_i32  : i32 {
      %cst = arith.constant 0.000000e+00 : f32
      %1 = vector.broadcast %cst : f32 to vector<14x14xf32>
      %cst_1 = arith.constant 0.000000e+00 : f32
      %2 = vector.broadcast %cst_1 : f32 to vector<7x14xf32>
      %3 = arith.index_cast %arg6 : i32 to index
      %c0 = arith.constant 0 : index
      %c0_2 = arith.constant 0 : index
      %c0_3 = arith.constant 0 : index
      %c0_4 = arith.constant 0 : index
      %4 = vector.load %arg2[%3, %c0, %c0_2, %c0_3, %c0_4] : memref<8x4x4x7x7xf32, #tpu.memory_space<vmem>>, vector<1x1x1x7x7xf32>
      %5 = vector.shape_cast %4 : vector<1x1x1x7x7xf32> to vector<7x7xf32>
      %c0_5 = arith.constant 0 : index
      %c0_6 = arith.constant 0 : index
      %c0_7 = arith.constant 0 : index
      %6 = vector.load %arg4[%c0_5, %c0_6, %c0_7] : memref<4x7x14xf32, #tpu.memory_space<vmem>>, vector<1x7x14xf32>
      %7 = vector.shape_cast %6 : vector<1x7x14xf32> to vector<7x14xf32>
      %cst_8 = arith.constant dense<0.000000e+00> : vector<7x14xf32>
      %8 = tpu.matmul %5, %7, %cst_8 {dimension_numbers = #tpu.dot_dimension_numbers<[1], [0], [0], [1], [0, 0, 1, 1], [], []>} : vector<7x7xf32>, vector<7x14xf32>, vector<7x14xf32> -> vector<7x14xf32>
      %9 = arith.addf %2, %8 : vector<7x14xf32>
      %10 = arith.index_cast %arg6 : i32 to index
      %c0_9 = arith.constant 0 : index
      %c1 = arith.constant 1 : index
      %c0_10 = arith.constant 0 : index
      %c0_11 = arith.constant 0 : index
      %11 = vector.load %arg2[%10, %c0_9, %c1, %c0_10, %c0_11] : memref<8x4x4x7x7xf32, #tpu.memory_space<vmem>>, vector<1x1x1x7x7xf32>
      %12 = vector.shape_cast %11 : vector<1x1x1x7x7xf32> to vector<7x7xf32>
      %c1_12 = arith.constant 1 : index
      %c0_13 = arith.constant 0 : index
      %c0_14 = arith.constant 0 : index
      %13 = vector.load %arg4[%c1_12, %c0_13, %c0_14] : memref<4x7x14xf32, #tpu.memory_space<vmem>>, vector<1x7x14xf32>
      %14 = vector.shape_cast %13 : vector<1x7x14xf32> to vector<7x14xf32>
      %cst_15 = arith.constant dense<0.000000e+00> : vector<7x14xf32>
      %15 = tpu.matmul %12, %14, %cst_15 {dimension_numbers = #tpu.dot_dimension_numbers<[1], [0], [0], [1], [0, 0, 1, 1], [], []>} : vector<7x7xf32>, vector<7x14xf32>, vector<7x14xf32> -> vector<7x14xf32>
      %16 = arith.addf %9, %15 : vector<7x14xf32>
      %17 = arith.index_cast %arg6 : i32 to index
      %c0_16 = arith.constant 0 : index
      %c2 = arith.constant 2 : index
      %c0_17 = arith.constant 0 : index
      %c0_18 = arith.constant 0 : index
      %18 = vector.load %arg2[%17, %c0_16, %c2, %c0_17, %c0_18] : memref<8x4x4x7x7xf32, #tpu.memory_space<vmem>>, vector<1x1x1x7x7xf32>
      %19 = vector.shape_cast %18 : vector<1x1x1x7x7xf32> to vector<7x7xf32>
      %c2_19 = arith.constant 2 : index
      %c0_20 = arith.constant 0 : index
      %c0_21 = arith.constant 0 : index
      %20 = vector.load %arg4[%c2_19, %c0_20, %c0_21] : memref<4x7x14xf32, #tpu.memory_space<vmem>>, vector<1x7x14xf32>
      %21 = vector.shape_cast %20 : vector<1x7x14xf32> to vector<7x14xf32>
      %cst_22 = arith.constant dense<0.000000e+00> : vector<7x14xf32>
      %22 = tpu.matmul %19, %21, %cst_22 {dimension_numbers = #tpu.dot_dimension_numbers<[1], [0], [0], [1], [0, 0, 1, 1], [], []>} : vector<7x7xf32>, vector<7x14xf32>, vector<7x14xf32> -> vector<7x14xf32>
      %23 = arith.addf %16, %22 : vector<7x14xf32>
      %24 = arith.index_cast %arg6 : i32 to index
      %c0_23 = arith.constant 0 : index
      %c3 = arith.constant 3 : index
      %c0_24 = arith.constant 0 : index
      %c0_25 = arith.constant 0 : index
      %25 = vector.load %arg2[%24, %c0_23, %c3, %c0_24, %c0_25] : memref<8x4x4x7x7xf32, #tpu.memory_space<vmem>>, vector<1x1x1x7x7xf32>
      %26 = vector.shape_cast %25 : vector<1x1x1x7x7xf32> to vector<7x7xf32>
      %c3_26 = arith.constant 3 : index
      %c0_27 = arith.constant 0 : index
      %c0_28 = arith.constant 0 : index
      %27 = vector.load %arg4[%c3_26, %c0_27, %c0_28] : memref<4x7x14xf32, #tpu.memory_space<vmem>>, vector<1x7x14xf32>
      %28 = vector.shape_cast %27 : vector<1x7x14xf32> to vector<7x14xf32>
      %cst_29 = arith.constant dense<0.000000e+00> : vector<7x14xf32>
      %29 = tpu.matmul %26, %28, %cst_29 {dimension_numbers = #tpu.dot_dimension_numbers<[1], [0], [0], [1], [0, 0, 1, 1], [], []>} : vector<7x7xf32>, vector<7x14xf32>, vector<7x14xf32> -> vector<7x14xf32>
      %30 = arith.addf %23, %29 : vector<7x14xf32>
      %c0_30 = arith.constant 0 : index
      %c0_31 = arith.constant 0 : index
      %c0_32 = arith.constant 0 : index
      %31 = vector.load %arg3[%c0_30, %c0_31, %c0_32] : memref<4x14x7xf32, #tpu.memory_space<vmem>>, vector<1x14x7xf32>
      %32 = vector.shape_cast %31 : vector<1x14x7xf32> to vector<14x7xf32>
      %cst_33 = arith.constant dense<0.000000e+00> : vector<14x14xf32>
      %33 = tpu.matmul %32, %30, %cst_33 {dimension_numbers = #tpu.dot_dimension_numbers<[1], [0], [0], [1], [0, 0, 1, 1], [], []>} : vector<14x7xf32>, vector<7x14xf32>, vector<14x14xf32> -> vector<14x14xf32>
      %34 = arith.addf %1, %33 : vector<14x14xf32>
      %cst_34 = arith.constant 0.000000e+00 : f32
      %35 = vector.broadcast %cst_34 : f32 to vector<7x14xf32>
      %36 = arith.index_cast %arg6 : i32 to index
      %c1_35 = arith.constant 1 : index
      %c0_36 = arith.constant 0 : index
      %c0_37 = arith.constant 0 : index
      %c0_38 = arith.constant 0 : index
      %37 = vector.load %arg2[%36, %c1_35, %c0_36, %c0_37, %c0_38] : memref<8x4x4x7x7xf32, #tpu.memory_space<vmem>>, vector<1x1x1x7x7xf32>
      %38 = vector.shape_cast %37 : vector<1x1x1x7x7xf32> to vector<7x7xf32>
      %c0_39 = arith.constant 0 : index
      %c0_40 = arith.constant 0 : index
      %c0_41 = arith.constant 0 : index
      %39 = vector.load %arg4[%c0_39, %c0_40, %c0_41] : memref<4x7x14xf32, #tpu.memory_space<vmem>>, vector<1x7x14xf32>
      %40 = vector.shape_cast %39 : vector<1x7x14xf32> to vector<7x14xf32>
      %cst_42 = arith.constant dense<0.000000e+00> : vector<7x14xf32>
      %41 = tpu.matmul %38, %40, %cst_42 {dimension_numbers = #tpu.dot_dimension_numbers<[1], [0], [0], [1], [0, 0, 1, 1], [], []>} : vector<7x7xf32>, vector<7x14xf32>, vector<7x14xf32> -> vector<7x14xf32>
      %42 = arith.addf %35, %41 : vector<7x14xf32>
      %43 = arith.index_cast %arg6 : i32 to index
      %c1_43 = arith.constant 1 : index
      %c1_44 = arith.constant 1 : index
      %c0_45 = arith.constant 0 : index
      %c0_46 = arith.constant 0 : index
      %44 = vector.load %arg2[%43, %c1_43, %c1_44, %c0_45, %c0_46] : memref<8x4x4x7x7xf32, #tpu.memory_space<vmem>>, vector<1x1x1x7x7xf32>
      %45 = vector.shape_cast %44 : vector<1x1x1x7x7xf32> to vector<7x7xf32>
      %c1_47 = arith.constant 1 : index
      %c0_48 = arith.constant 0 : index
      %c0_49 = arith.constant 0 : index
      %46 = vector.load %arg4[%c1_47, %c0_48, %c0_49] : memref<4x7x14xf32, #tpu.memory_space<vmem>>, vector<1x7x14xf32>
      %47 = vector.shape_cast %46 : vector<1x7x14xf32> to vector<7x14xf32>
      %cst_50 = arith.constant dense<0.000000e+00> : vector<7x14xf32>
      %48 = tpu.matmul %45, %47, %cst_50 {dimension_numbers = #tpu.dot_dimension_numbers<[1], [0], [0], [1], [0, 0, 1, 1], [], []>} : vector<7x7xf32>, vector<7x14xf32>, vector<7x14xf32> -> vector<7x14xf32>
      %49 = arith.addf %42, %48 : vector<7x14xf32>
      %50 = arith.index_cast %arg6 : i32 to index
      %c1_51 = arith.constant 1 : index
      %c2_52 = arith.constant 2 : index
      %c0_53 = arith.constant 0 : index
      %c0_54 = arith.constant 0 : index
      %51 = vector.load %arg2[%50, %c1_51, %c2_52, %c0_53, %c0_54] : memref<8x4x4x7x7xf32, #tpu.memory_space<vmem>>, vector<1x1x1x7x7xf32>
      %52 = vector.shape_cast %51 : vector<1x1x1x7x7xf32> to vector<7x7xf32>
      %c2_55 = arith.constant 2 : index
      %c0_56 = arith.constant 0 : index
      %c0_57 = arith.constant 0 : index
      %53 = vector.load %arg4[%c2_55, %c0_56, %c0_57] : memref<4x7x14xf32, #tpu.memory_space<vmem>>, vector<1x7x14xf32>
      %54 = vector.shape_cast %53 : vector<1x7x14xf32> to vector<7x14xf32>
      %cst_58 = arith.constant dense<0.000000e+00> : vector<7x14xf32>
      %55 = tpu.matmul %52, %54, %cst_58 {dimension_numbers = #tpu.dot_dimension_numbers<[1], [0], [0], [1], [0, 0, 1, 1], [], []>} : vector<7x7xf32>, vector<7x14xf32>, vector<7x14xf32> -> vector<7x14xf32>
      %56 = arith.addf %49, %55 : vector<7x14xf32>
      %57 = arith.index_cast %arg6 : i32 to index
      %c1_59 = arith.constant 1 : index
      %c3_60 = arith.constant 3 : index
      %c0_61 = arith.constant 0 : index
      %c0_62 = arith.constant 0 : index
      %58 = vector.load %arg2[%57, %c1_59, %c3_60, %c0_61, %c0_62] : memref<8x4x4x7x7xf32, #tpu.memory_space<vmem>>, vector<1x1x1x7x7xf32>
      %59 = vector.shape_cast %58 : vector<1x1x1x7x7xf32> to vector<7x7xf32>
      %c3_63 = arith.constant 3 : index
      %c0_64 = arith.constant 0 : index
      %c0_65 = arith.constant 0 : index
      %60 = vector.load %arg4[%c3_63, %c0_64, %c0_65] : memref<4x7x14xf32, #tpu.memory_space<vmem>>, vector<1x7x14xf32>
      %61 = vector.shape_cast %60 : vector<1x7x14xf32> to vector<7x14xf32>
      %cst_66 = arith.constant dense<0.000000e+00> : vector<7x14xf32>
      %62 = tpu.matmul %59, %61, %cst_66 {dimension_numbers = #tpu.dot_dimension_numbers<[1], [0], [0], [1], [0, 0, 1, 1], [], []>} : vector<7x7xf32>, vector<7x14xf32>, vector<7x14xf32> -> vector<7x14xf32>
      %63 = arith.addf %56, %62 : vector<7x14xf32>
      %c1_67 = arith.constant 1 : index
      %c0_68 = arith.constant 0 : index
      %c0_69 = arith.constant 0 : index
      %64 = vector.load %arg3[%c1_67, %c0_68, %c0_69] : memref<4x14x7xf32, #tpu.memory_space<vmem>>, vector<1x14x7xf32>
      %65 = vector.shape_cast %64 : vector<1x14x7xf32> to vector<14x7xf32>
      %cst_70 = arith.constant dense<0.000000e+00> : vector<14x14xf32>
      %66 = tpu.matmul %65, %63, %cst_70 {dimension_numbers = #tpu.dot_dimension_numbers<[1], [0], [0], [1], [0, 0, 1, 1], [], []>} : vector<14x7xf32>, vector<7x14xf32>, vector<14x14xf32> -> vector<14x14xf32>
      %67 = arith.addf %34, %66 : vector<14x14xf32>
      %cst_71 = arith.constant 0.000000e+00 : f32
      %68 = vector.broadcast %cst_71 : f32 to vector<7x14xf32>
      %69 = arith.index_cast %arg6 : i32 to index
      %c2_72 = arith.constant 2 : index
      %c0_73 = arith.constant 0 : index
      %c0_74 = arith.constant 0 : index
      %c0_75 = arith.constant 0 : index
      %70 = vector.load %arg2[%69, %c2_72, %c0_73, %c0_74, %c0_75] : memref<8x4x4x7x7xf32, #tpu.memory_space<vmem>>, vector<1x1x1x7x7xf32>
      %71 = vector.shape_cast %70 : vector<1x1x1x7x7xf32> to vector<7x7xf32>
      %c0_76 = arith.constant 0 : index
      %c0_77 = arith.constant 0 : index
      %c0_78 = arith.constant 0 : index
      %72 = vector.load %arg4[%c0_76, %c0_77, %c0_78] : memref<4x7x14xf32, #tpu.memory_space<vmem>>, vector<1x7x14xf32>
      %73 = vector.shape_cast %72 : vector<1x7x14xf32> to vector<7x14xf32>
      %cst_79 = arith.constant dense<0.000000e+00> : vector<7x14xf32>
      %74 = tpu.matmul %71, %73, %cst_79 {dimension_numbers = #tpu.dot_dimension_numbers<[1], [0], [0], [1], [0, 0, 1, 1], [], []>} : vector<7x7xf32>, vector<7x14xf32>, vector<7x14xf32> -> vector<7x14xf32>
      %75 = arith.addf %68, %74 : vector<7x14xf32>
      %76 = arith.index_cast %arg6 : i32 to index
      %c2_80 = arith.constant 2 : index
      %c1_81 = arith.constant 1 : index
      %c0_82 = arith.constant 0 : index
      %c0_83 = arith.constant 0 : index
      %77 = vector.load %arg2[%76, %c2_80, %c1_81, %c0_82, %c0_83] : memref<8x4x4x7x7xf32, #tpu.memory_space<vmem>>, vector<1x1x1x7x7xf32>
      %78 = vector.shape_cast %77 : vector<1x1x1x7x7xf32> to vector<7x7xf32>
      %c1_84 = arith.constant 1 : index
      %c0_85 = arith.constant 0 : index
      %c0_86 = arith.constant 0 : index
      %79 = vector.load %arg4[%c1_84, %c0_85, %c0_86] : memref<4x7x14xf32, #tpu.memory_space<vmem>>, vector<1x7x14xf32>
      %80 = vector.shape_cast %79 : vector<1x7x14xf32> to vector<7x14xf32>
      %cst_87 = arith.constant dense<0.000000e+00> : vector<7x14xf32>
      %81 = tpu.matmul %78, %80, %cst_87 {dimension_numbers = #tpu.dot_dimension_numbers<[1], [0], [0], [1], [0, 0, 1, 1], [], []>} : vector<7x7xf32>, vector<7x14xf32>, vector<7x14xf32> -> vector<7x14xf32>
      %82 = arith.addf %75, %81 : vector<7x14xf32>
      %83 = arith.index_cast %arg6 : i32 to index
      %c2_88 = arith.constant 2 : index
      %c2_89 = arith.constant 2 : index
      %c0_90 = arith.constant 0 : index
      %c0_91 = arith.constant 0 : index
      %84 = vector.load %arg2[%83, %c2_88, %c2_89, %c0_90, %c0_91] : memref<8x4x4x7x7xf32, #tpu.memory_space<vmem>>, vector<1x1x1x7x7xf32>
      %85 = vector.shape_cast %84 : vector<1x1x1x7x7xf32> to vector<7x7xf32>
      %c2_92 = arith.constant 2 : index
      %c0_93 = arith.constant 0 : index
      %c0_94 = arith.constant 0 : index
      %86 = vector.load %arg4[%c2_92, %c0_93, %c0_94] : memref<4x7x14xf32, #tpu.memory_space<vmem>>, vector<1x7x14xf32>
      %87 = vector.shape_cast %86 : vector<1x7x14xf32> to vector<7x14xf32>
      %cst_95 = arith.constant dense<0.000000e+00> : vector<7x14xf32>
      %88 = tpu.matmul %85, %87, %cst_95 {dimension_numbers = #tpu.dot_dimension_numbers<[1], [0], [0], [1], [0, 0, 1, 1], [], []>} : vector<7x7xf32>, vector<7x14xf32>, vector<7x14xf32> -> vector<7x14xf32>
      %89 = arith.addf %82, %88 : vector<7x14xf32>
      %90 = arith.index_cast %arg6 : i32 to index
      %c2_96 = arith.constant 2 : index
      %c3_97 = arith.constant 3 : index
      %c0_98 = arith.constant 0 : index
      %c0_99 = arith.constant 0 : index
      %91 = vector.load %arg2[%90, %c2_96, %c3_97, %c0_98, %c0_99] : memref<8x4x4x7x7xf32, #tpu.memory_space<vmem>>, vector<1x1x1x7x7xf32>
      %92 = vector.shape_cast %91 : vector<1x1x1x7x7xf32> to vector<7x7xf32>
      %c3_100 = arith.constant 3 : index
      %c0_101 = arith.constant 0 : index
      %c0_102 = arith.constant 0 : index
      %93 = vector.load %arg4[%c3_100, %c0_101, %c0_102] : memref<4x7x14xf32, #tpu.memory_space<vmem>>, vector<1x7x14xf32>
      %94 = vector.shape_cast %93 : vector<1x7x14xf32> to vector<7x14xf32>
      %cst_103 = arith.constant dense<0.000000e+00> : vector<7x14xf32>
      %95 = tpu.matmul %92, %94, %cst_103 {dimension_numbers = #tpu.dot_dimension_numbers<[1], [0], [0], [1], [0, 0, 1, 1], [], []>} : vector<7x7xf32>, vector<7x14xf32>, vector<7x14xf32> -> vector<7x14xf32>
      %96 = arith.addf %89, %95 : vector<7x14xf32>
      %c2_104 = arith.constant 2 : index
      %c0_105 = arith.constant 0 : index
      %c0_106 = arith.constant 0 : index
      %97 = vector.load %arg3[%c2_104, %c0_105, %c0_106] : memref<4x14x7xf32, #tpu.memory_space<vmem>>, vector<1x14x7xf32>
      %98 = vector.shape_cast %97 : vector<1x14x7xf32> to vector<14x7xf32>
      %cst_107 = arith.constant dense<0.000000e+00> : vector<14x14xf32>
      %99 = tpu.matmul %98, %96, %cst_107 {dimension_numbers = #tpu.dot_dimension_numbers<[1], [0], [0], [1], [0, 0, 1, 1], [], []>} : vector<14x7xf32>, vector<7x14xf32>, vector<14x14xf32> -> vector<14x14xf32>
      %100 = arith.addf %67, %99 : vector<14x14xf32>
      %cst_108 = arith.constant 0.000000e+00 : f32
      %101 = vector.broadcast %cst_108 : f32 to vector<7x14xf32>
      %102 = arith.index_cast %arg6 : i32 to index
      %c3_109 = arith.constant 3 : index
      %c0_110 = arith.constant 0 : index
      %c0_111 = arith.constant 0 : index
      %c0_112 = arith.constant 0 : index
      %103 = vector.load %arg2[%102, %c3_109, %c0_110, %c0_111, %c0_112] : memref<8x4x4x7x7xf32, #tpu.memory_space<vmem>>, vector<1x1x1x7x7xf32>
      %104 = vector.shape_cast %103 : vector<1x1x1x7x7xf32> to vector<7x7xf32>
      %c0_113 = arith.constant 0 : index
      %c0_114 = arith.constant 0 : index
      %c0_115 = arith.constant 0 : index
      %105 = vector.load %arg4[%c0_113, %c0_114, %c0_115] : memref<4x7x14xf32, #tpu.memory_space<vmem>>, vector<1x7x14xf32>
      %106 = vector.shape_cast %105 : vector<1x7x14xf32> to vector<7x14xf32>
      %cst_116 = arith.constant dense<0.000000e+00> : vector<7x14xf32>
      %107 = tpu.matmul %104, %106, %cst_116 {dimension_numbers = #tpu.dot_dimension_numbers<[1], [0], [0], [1], [0, 0, 1, 1], [], []>} : vector<7x7xf32>, vector<7x14xf32>, vector<7x14xf32> -> vector<7x14xf32>
      %108 = arith.addf %101, %107 : vector<7x14xf32>
      %109 = arith.index_cast %arg6 : i32 to index
      %c3_117 = arith.constant 3 : index
      %c1_118 = arith.constant 1 : index
      %c0_119 = arith.constant 0 : index
      %c0_120 = arith.constant 0 : index
      %110 = vector.load %arg2[%109, %c3_117, %c1_118, %c0_119, %c0_120] : memref<8x4x4x7x7xf32, #tpu.memory_space<vmem>>, vector<1x1x1x7x7xf32>
      %111 = vector.shape_cast %110 : vector<1x1x1x7x7xf32> to vector<7x7xf32>
      %c1_121 = arith.constant 1 : index
      %c0_122 = arith.constant 0 : index
      %c0_123 = arith.constant 0 : index
      %112 = vector.load %arg4[%c1_121, %c0_122, %c0_123] : memref<4x7x14xf32, #tpu.memory_space<vmem>>, vector<1x7x14xf32>
      %113 = vector.shape_cast %112 : vector<1x7x14xf32> to vector<7x14xf32>
      %cst_124 = arith.constant dense<0.000000e+00> : vector<7x14xf32>
      %114 = tpu.matmul %111, %113, %cst_124 {dimension_numbers = #tpu.dot_dimension_numbers<[1], [0], [0], [1], [0, 0, 1, 1], [], []>} : vector<7x7xf32>, vector<7x14xf32>, vector<7x14xf32> -> vector<7x14xf32>
      %115 = arith.addf %108, %114 : vector<7x14xf32>
      %116 = arith.index_cast %arg6 : i32 to index
      %c3_125 = arith.constant 3 : index
      %c2_126 = arith.constant 2 : index
      %c0_127 = arith.constant 0 : index
      %c0_128 = arith.constant 0 : index
      %117 = vector.load %arg2[%116, %c3_125, %c2_126, %c0_127, %c0_128] : memref<8x4x4x7x7xf32, #tpu.memory_space<vmem>>, vector<1x1x1x7x7xf32>
      %118 = vector.shape_cast %117 : vector<1x1x1x7x7xf32> to vector<7x7xf32>
      %c2_129 = arith.constant 2 : index
      %c0_130 = arith.constant 0 : index
      %c0_131 = arith.constant 0 : index
      %119 = vector.load %arg4[%c2_129, %c0_130, %c0_131] : memref<4x7x14xf32, #tpu.memory_space<vmem>>, vector<1x7x14xf32>
      %120 = vector.shape_cast %119 : vector<1x7x14xf32> to vector<7x14xf32>
      %cst_132 = arith.constant dense<0.000000e+00> : vector<7x14xf32>
      %121 = tpu.matmul %118, %120, %cst_132 {dimension_numbers = #tpu.dot_dimension_numbers<[1], [0], [0], [1], [0, 0, 1, 1], [], []>} : vector<7x7xf32>, vector<7x14xf32>, vector<7x14xf32> -> vector<7x14xf32>
      %122 = arith.addf %115, %121 : vector<7x14xf32>
      %123 = arith.index_cast %arg6 : i32 to index
      %c3_133 = arith.constant 3 : index
      %c3_134 = arith.constant 3 : index
      %c0_135 = arith.constant 0 : index
      %c0_136 = arith.constant 0 : index
      %124 = vector.load %arg2[%123, %c3_133, %c3_134, %c0_135, %c0_136] : memref<8x4x4x7x7xf32, #tpu.memory_space<vmem>>, vector<1x1x1x7x7xf32>
      %125 = vector.shape_cast %124 : vector<1x1x1x7x7xf32> to vector<7x7xf32>
      %c3_137 = arith.constant 3 : index
      %c0_138 = arith.constant 0 : index
      %c0_139 = arith.constant 0 : index
      %126 = vector.load %arg4[%c3_137, %c0_138, %c0_139] : memref<4x7x14xf32, #tpu.memory_space<vmem>>, vector<1x7x14xf32>
      %127 = vector.shape_cast %126 : vector<1x7x14xf32> to vector<7x14xf32>
      %cst_140 = arith.constant dense<0.000000e+00> : vector<7x14xf32>
      %128 = tpu.matmul %125, %127, %cst_140 {dimension_numbers = #tpu.dot_dimension_numbers<[1], [0], [0], [1], [0, 0, 1, 1], [], []>} : vector<7x7xf32>, vector<7x14xf32>, vector<7x14xf32> -> vector<7x14xf32>
      %129 = arith.addf %122, %128 : vector<7x14xf32>
      %c3_141 = arith.constant 3 : index
      %c0_142 = arith.constant 0 : index
      %c0_143 = arith.constant 0 : index
      %130 = vector.load %arg3[%c3_141, %c0_142, %c0_143] : memref<4x14x7xf32, #tpu.memory_space<vmem>>, vector<1x14x7xf32>
      %131 = vector.shape_cast %130 : vector<1x14x7xf32> to vector<14x7xf32>
      %cst_144 = arith.constant dense<0.000000e+00> : vector<14x14xf32>
      %132 = tpu.matmul %131, %129, %cst_144 {dimension_numbers = #tpu.dot_dimension_numbers<[1], [0], [0], [1], [0, 0, 1, 1], [], []>} : vector<14x7xf32>, vector<7x14xf32>, vector<14x14xf32> -> vector<14x14xf32>
      %133 = arith.addf %100, %132 : vector<14x14xf32>
      %134 = arith.index_cast %arg6 : i32 to index
      %c0_145 = arith.constant 0 : index
      %c0_146 = arith.constant 0 : index
      %135 = vector.load %arg5[%134, %c0_145, %c0_146] : memref<8x14x14xf32, #tpu.memory_space<vmem>>, vector<1x14x14xf32>
      %136 = vector.shape_cast %135 : vector<1x14x14xf32> to vector<14x14xf32>
      %137 = vector.shape_cast %133 : vector<14x14xf32> to vector<1x14x14xf32>
      tpu.vector_store %arg5[%134, %c0_145, %c0_146], %137 {strides = array<i32>} : memref<8x14x14xf32, #tpu.memory_space<vmem>>, vector<1x14x14xf32>,
    }
    %c8_i32_0 = arith.constant 8 : i32
    return
  }
  func.func @transform_0(%arg0: i32, %arg1: i32) -> (i32, i32, i32, i32, i32) {
    %c0_i32 = arith.constant 0 : i32
    %c0_i32_0 = arith.constant 0 : i32
    %c0_i32_1 = arith.constant 0 : i32
    %c0_i32_2 = arith.constant 0 : i32
    %c0_i32_3 = arith.constant 0 : i32
    return %arg0, %c0_i32, %c0_i32_0, %c0_i32_1, %c0_i32_2 : i32, i32, i32, i32, i32
  }
  func.func @transform_1(%arg0: i32, %arg1: i32) -> (i32, i32, i32) {
    %c0_i32 = arith.constant 0 : i32
    %c0_i32_0 = arith.constant 0 : i32
    %c0_i32_1 = arith.constant 0 : i32
    return %c0_i32, %arg1, %c0_i32_0 : i32, i32, i32
  }
  func.func @transform_2(%arg0: i32, %arg1: i32) -> (i32, i32, i32) {
    %c0_i32 = arith.constant 0 : i32
    %c0_i32_0 = arith.constant 0 : i32
    %c0_i32_1 = arith.constant 0 : i32
    %c0_i32_2 = arith.constant 0 : i32
    return %c0_i32, %c0_i32_0, %c0_i32_1 : i32, i32, i32
  }
  func.func @transform_3(%arg0: i32, %arg1: i32) -> (i32, i32, i32) {
    %c0_i32 = arith.constant 0 : i32
    %c0_i32_0 = arith.constant 0 : i32
    return %arg0, %arg1, %c0_i32 : i32, i32, i32
  }
}

</mosaic_0001>

<llo_original>
// kernel: patch2im_pallas.1
$region0: #{patch2im_pallas.1}
  #allocation0 [shape = 'u32[]', space=smem, size = 0x4, offset = 0x4, fixed_abs, tag = 'smem constant byte address 0x4 - core index']
  #allocation1 [shape = 'u32[144,128]{1,0:T(1,128)}', space=vmem, size = 0x12000, scoped, tag = 'internal scratch']
  %s0 = inlined_call_operand.vmem [shape: f32[8,4,4,7,7], index: 0, kind: input, shape index: {}]
  %s1 = inlined_call_operand.vmem [shape: f32[4,14,7], index: 1, kind: input, shape index: {}]
  %s2 = inlined_call_operand.vmem [shape: f32[4,7,14], index: 2, kind: input, shape index: {}]
  %s3 = inlined_call_operand.vmem [shape: f32[8,14,14], index: 3, kind: output, shape index: {}]
  %s4 = sld [smem:[#allocation0]]
  $region29: #{patch2im_pallas.1} parent=0
    _
  %s6 = ssub.s32 1, %s4
  %s7 = scalar_select 0, %s6, %s4
  // Predicated region
  $region2: #{patch2im_pallas.1} parent=0 // pred_check
    _
  $region3: #{patch2im_pallas.1} parent=0 // pred_check_branch
    %9 = sbr.rel (0) target = $region5
  $region4: #{patch2im_pallas.1} parent=0 // pred_region
    _
  $region5: #{patch2im_pallas.1} parent=0 // pred_fallthru
    _
  // Predicated region
  $region6: #{patch2im_pallas.1} parent=0 // pred_check
    _
  $region7: #{patch2im_pallas.1} parent=0 // pred_check_branch
    %11 = sbr.rel (0) target = $region9
  $region8: #{patch2im_pallas.1} parent=0 // pred_region
    _
  $region9: #{patch2im_pallas.1} parent=0 // pred_fallthru
    _
  // Predicated region
  $region10: #{patch2im_pallas.1} parent=0 // pred_check
    _
  $region11: #{patch2im_pallas.1} parent=0 // pred_check_branch
    %13 = sbr.rel (0) target = $region13
  $region12: #{patch2im_pallas.1} parent=0 // pred_region
    _
  $region13: #{patch2im_pallas.1} parent=0 // pred_fallthru
    _
  loop: start=0, step=1, limit=8
  $region14: #{patch2im_pallas.1} parent=0 // loop_pre_header
    _
  $region15: #{patch2im_pallas.1} parent=0 // loop_header
    %s15 = sphi 0, %s19
    %p16 = scmp.ge.s32.totalorder %s15, 8
  $region16: #{patch2im_pallas.1} parent=0 // loop_header_branch
    %18 = sbr.rel (%p16) target = $region20
  $region17: #{patch2im_pallas.1} parent=0 // loop_body
    %s20 = smul.u32 %s15, 128
    %s21 = scalar_lea.vmem %s0, %s20
    %v22 = vld [vmem:[%s21] sm:$0x7f]
    %v23 = vld [vmem:[%s2] sm:$0x7f]
    %s24 = sadd.s32 8, %s20
    %s25 = scalar_lea.vmem %s0, %s24
    %v26 = vld [vmem:[%s25] sm:$0x7f]
    %s27 = scalar_lea.vmem %s2, 8
    %v28 = vld [vmem:[%s27] sm:$0x7f]
    %vm29 = vcmask 56320
    %v31 = vsel %vm29, %v26, 0
    %vm33 = vcmask 1046528
    %v35 = vsel %vm33, %v28, 0
    %37 = vmatprep.subr.mxu0 0.0
    %38 = vmatpush1.msra.mxu0 %v35
    %39 = vmatprep.subr.mxu0 0.0
    %40 = vmatpush1.msra.mxu0 0.0
    %41 = vmatprep.subr.mxu0 0.0
    %42 = vmatpush1.msra.mxu0 0.0
    %43 = vmatprep.subr.mxu0 0.0
    %44 = vmatpush1.msra.mxu0 0.0
    %45 = vmatprep.subr.mxu0 0.0
    %46 = vmatpush1.msra.mxu0 0.0
    %47 = vmatprep.subr.mxu0 0.0
    %48 = vmatpush1.msra.mxu0 0.0
    %49 = vmatprep.subr.mxu0 0.0
    %50 = vmatpush1.msra.mxu0 0.0
    %51 = vmatprep.subr.mxu0 0.0
    %52 = vmatpush1.msra.mxu0 0.0
    %53 = vmatprep.subr.mxu0 0.0
    %54 = vmatpush1.msra.mxu0 0.0
    %55 = vmatprep.subr.mxu0 0.0
    %56 = vmatpush1.msra.mxu0 0.0
    %57 = vmatprep.subr.mxu0 0.0
    %58 = vmatpush1.msra.mxu0 0.0
    %59 = vmatprep.subr.mxu0 0.0
    %60 = vmatpush1.msra.mxu0 0.0
    %61 = vmatprep.subr.mxu0 0.0
    %62 = vmatpush1.msra.mxu0 0.0
    %63 = vmatprep.subr.mxu0 0.0
    %64 = vmatpush1.msra.mxu0 0.0
    %65 = vmatprep.subr.mxu0 0.0
    %66 = vmatpush1.msra.mxu0 0.0
    %67 = vmatprep.subr.mxu0 0.0
    %68 = vmatpush1.msra.mxu0 0.0
    %69 = vmatprep.subr.mxu0 0.0
    %70 = vmatpush1.msra.mxu0 0.0
    %71 = vmatprep.subr.mxu0 0.0
    %72 = vmatpush1.msra.mxu0 0.0
    %73 = vmatprep.subr.mxu0 0.0
    %74 = vmatpush1.msra.mxu0 0.0
    %75 = vmatprep.subr.mxu0 0.0
    %76 = vmatpush1.msra.mxu0 0.0
    %77 = vmatprep.subr.mxu0 0.0
    %78 = vmatpush1.msra.mxu0 0.0
    %79 = vmatprep.subr.mxu0 0.0
    %80 = vmatpush1.msra.mxu0 0.0
    %81 = vmatprep.subr.mxu0 0.0
    %82 = vmatpush1.msra.mxu0 0.0
    %83 = vmatprep.subr.mxu0 0.0
    %84 = vmatpush1.msra.mxu0 0.0
    %85 = vmatprep.subr.mxu0 0.0
    %86 = vmatpush1.msra.mxu0 0.0
    %87 = vmatprep.subr.mxu0 0.0
    %88 = vmatpush1.msra.mxu0 0.0
    %89 = vmatprep.subr.mxu0 0.0
    %90 = vmatpush1.msra.mxu0 0.0
    %91 = vmatprep.subr.mxu0 0.0
    %92 = vmatpush1.msra.mxu0 0.0
    %93 = vmatprep.subr.mxu0 0.0
    %94 = vmatpush1.msra.mxu0 0.0
    %95 = vmatprep.subr.mxu0 0.0
    %96 = vmatpush1.msra.mxu0 0.0
    %97 = vmatprep.subr.mxu0 0.0
    %98 = vmatpush1.msra.mxu0 0.0
    %99 = vmatprep.subr.mxu0 0.0
    %100 = vmatpush1.msra.mxu0 0.0
    %101 = vmatprep.mubr.f32.mxu0 0.0
    %102 = vmatmul.mubr.f32.gmra.mrb[0].mxu0 %v31
    %v103 = vpop.f32.mrb[0].mxu0
    %v104 = vadd.f32 0.0, %v103
    %v105 = vpop.f32.mrb[0].mxu0
    %106 = vdwg.mxu0
    %v108 = vsel %vm29, %v22, 0
    %v111 = vsel %vm33, %v23, 0
    %113 = vmatprep.subr.mxu0 0.0
    %114 = vmatpush1.msra.mxu0 %v111
    %115 = vmatprep.subr.mxu0 0.0
    %116 = vmatpush1.msra.mxu0 0.0
    %117 = vmatprep.subr.mxu0 0.0
    %118 = vmatpush1.msra.mxu0 0.0
    %119 = vmatprep.subr.mxu0 0.0
    %120 = vmatpush1.msra.mxu0 0.0
    %121 = vmatprep.subr.mxu0 0.0
    %122 = vmatpush1.msra.mxu0 0.0
    %123 = vmatprep.subr.mxu0 0.0
    %124 = vmatpush1.msra.mxu0 0.0
    %125 = vmatprep.subr.mxu0 0.0
    %126 = vmatpush1.msra.mxu0 0.0
    %127 = vmatprep.subr.mxu0 0.0
    %128 = vmatpush1.msra.mxu0 0.0
    %129 = vmatprep.subr.mxu0 0.0
    %130 = vmatpush1.msra.mxu0 0.0
    %131 = vmatprep.subr.mxu0 0.0
    %132 = vmatpush1.msra.mxu0 0.0
    %133 = vmatprep.subr.mxu0 0.0
    %134 = vmatpush1.msra.mxu0 0.0
    %135 = vmatprep.subr.mxu0 0.0
    %136 = vmatpush1.msra.mxu0 0.0
    %137 = vmatprep.subr.mxu0 0.0
    %138 = vmatpush1.msra.mxu0 0.0
    %139 = vmatprep.subr.mxu0 0.0
    %140 = vmatpush1.msra.mxu0 0.0
    %141 = vmatprep.subr.mxu0 0.0
    %142 = vmatpush1.msra.mxu0 0.0
    %143 = vmatprep.subr.mxu0 0.0
    %144 = vmatpush1.msra.mxu0 0.0
    %145 = vmatprep.subr.mxu0 0.0
    %146 = vmatpush1.msra.mxu0 0.0
    %147 = vmatprep.subr.mxu0 0.0
    %148 = vmatpush1.msra.mxu0 0.0
    %149 = vmatprep.subr.mxu0 0.0
    %150 = vmatpush1.msra.mxu0 0.0
    %151 = vmatprep.subr.mxu0 0.0
    %152 = vmatpush1.msra.mxu0 0.0
    %153 = vmatprep.subr.mxu0 0.0
    %154 = vmatpush1.msra.mxu0 0.0
    %155 = vmatprep.subr.mxu0 0.0
    %156 = vmatpush1.msra.mxu0 0.0
    %157 = vmatprep.subr.mxu0 0.0
    %158 = vmatpush1.msra.mxu0 0.0
    %159 = vmatprep.subr.mxu0 0.0
    %160 = vmatpush1.msra.mxu0 0.0
    %161 = vmatprep.subr.mxu0 0.0
    %162 = vmatpush1.msra.mxu0 0.0
    %163 = vmatprep.subr.mxu0 0.0
    %164 = vmatpush1.msra.mxu0 0.0
    %165 = vmatprep.subr.mxu0 0.0
    %166 = vmatpush1.msra.mxu0 0.0
    %167 = vmatprep.subr.mxu0 0.0
    %168 = vmatpush1.msra.mxu0 0.0
    %169 = vmatprep.subr.mxu0 0.0
    %170 = vmatpush1.msra.mxu0 0.0
    %171 = vmatprep.subr.mxu0 0.0
    %172 = vmatpush1.msra.mxu0 0.0
    %173 = vmatprep.subr.mxu0 0.0
    %174 = vmatpush1.msra.mxu0 0.0
    %175 = vmatprep.subr.mxu0 0.0
    %176 = vmatpush1.msra.mxu0 0.0
    %177 = vmatprep.mubr.f32.mxu0 0.0
    %178 = vmatmul.mubr.f32.gmra.mrb[0].mxu0 %v108
    %v179 = vpop.f32.mrb[0].mxu0
    %v180 = vadd.f32 %v104, %v179
    %v181 = vpop.f32.mrb[0].mxu0
    %182 = vdwg.mxu0
    %s183 = sadd.s32 16, %s20
    %s184 = scalar_lea.vmem %s0, %s183
    %v185 = vld [vmem:[%s184] sm:$0x7f]
    %s186 = scalar_lea.vmem %s2, 16
    %v187 = vld [vmem:[%s186] sm:$0x7f]
    %v189 = vsel %vm29, %v185, 0
    %v192 = vsel %vm33, %v187, 0
    %194 = vmatprep.subr.mxu0 0.0
    %195 = vmatpush1.msra.mxu0 %v192
    %196 = vmatprep.subr.mxu0 0.0
    %197 = vmatpush1.msra.mxu0 0.0
    %198 = vmatprep.subr.mxu0 0.0
    %199 = vmatpush1.msra.mxu0 0.0
    %200 = vmatprep.subr.mxu0 0.0
    %201 = vmatpush1.msra.mxu0 0.0
    %202 = vmatprep.subr.mxu0 0.0
    %203 = vmatpush1.msra.mxu0 0.0
    %204 = vmatprep.subr.mxu0 0.0
    %205 = vmatpush1.msra.mxu0 0.0
    %206 = vmatprep.subr.mxu0 0.0
    %207 = vmatpush1.msra.mxu0 0.0
    %208 = vmatprep.subr.mxu0 0.0
    %209 = vmatpush1.msra.mxu0 0.0
    %210 = vmatprep.subr.mxu0 0.0
    %211 = vmatpush1.msra.mxu0 0.0
    %212 = vmatprep.subr.mxu0 0.0
    %213 = vmatpush1.msra.mxu0 0.0
    %214 = vmatprep.subr.mxu0 0.0
    %215 = vmatpush1.msra.mxu0 0.0
    %216 = vmatprep.subr.mxu0 0.0
    %217 = vmatpush1.msra.mxu0 0.0
    %218 = vmatprep.subr.mxu0 0.0
    %219 = vmatpush1.msra.mxu0 0.0
    %220 = vmatprep.subr.mxu0 0.0
    %221 = vmatpush1.msra.mxu0 0.0
    %222 = vmatprep.subr.mxu0 0.0
    %223 = vmatpush1.msra.mxu0 0.0
    %224 = vmatprep.subr.mxu0 0.0
    %225 = vmatpush1.msra.mxu0 0.0
    %226 = vmatprep.subr.mxu0 0.0
    %227 = vmatpush1.msra.mxu0 0.0
    %228 = vmatprep.subr.mxu0 0.0
    %229 = vmatpush1.msra.mxu0 0.0
    %230 = vmatprep.subr.mxu0 0.0
    %231 = vmatpush1.msra.mxu0 0.0
    %232 = vmatprep.subr.mxu0 0.0
    %233 = vmatpush1.msra.mxu0 0.0
    %234 = vmatprep.subr.mxu0 0.0
    %235 = vmatpush1.msra.mxu0 0.0
    %236 = vmatprep.subr.mxu0 0.0
    %237 = vmatpush1.msra.mxu0 0.0
    %238 = vmatprep.subr.mxu0 0.0
    %239 = vmatpush1.msra.mxu0 0.0
    %240 = vmatprep.subr.mxu0 0.0
    %241 = vmatpush1.msra.mxu0 0.0
    %242 = vmatprep.subr.mxu0 0.0
    %243 = vmatpush1.msra.mxu0 0.0
    %244 = vmatprep.subr.mxu0 0.0
    %245 = vmatpush1.msra.mxu0 0.0
    %246 = vmatprep.subr.mxu0 0.0
    %247 = vmatpush1.msra.mxu0 0.0
    %248 = vmatprep.subr.mxu0 0.0
    %249 = vmatpush1.msra.mxu0 0.0
    %250 = vmatprep.subr.mxu0 0.0
    %251 = vmatpush1.msra.mxu0 0.0
    %252 = vmatprep.subr.mxu0 0.0
    %253 = vmatpush1.msra.mxu0 0.0
    %254 = vmatprep.subr.mxu0 0.0
    %255 = vmatpush1.msra.mxu0 0.0
    %256 = vmatprep.subr.mxu0 0.0
    %257 = vmatpush1.msra.mxu0 0.0
    %258 = vmatprep.mubr.f32.mxu0 0.0
    %259 = vmatmul.mubr.f32.gmra.mrb[0].mxu0 %v189
    %v260 = vpop.f32.mrb[0].mxu0
    %v261 = vadd.f32 0.0, %v260
    %v262 = vpop.f32.mrb[0].mxu0
    %263 = vdwg.mxu0
    %v264 = vadd.f32 %v180, %v261
    %s265 = sadd.s32 24, %s20
    %s266 = scalar_lea.vmem %s0, %s265
    %v267 = vld [vmem:[%s266] sm:$0x7f]
    %s268 = scalar_lea.vmem %s2, 24
    %v269 = vld [vmem:[%s268] sm:$0x7f]
    %v271 = vsel %vm29, %v267, 0
    %v274 = vsel %vm33, %v269, 0
    %276 = vmatprep.subr.mxu0 0.0
    %277 = vmatpush1.msra.mxu0 %v274
    %278 = vmatprep.subr.mxu0 0.0
    %279 = vmatpush1.msra.mxu0 0.0
    %280 = vmatprep.subr.mxu0 0.0
    %281 = vmatpush1.msra.mxu0 0.0
    %282 = vmatprep.subr.mxu0 0.0
    %283 = vmatpush1.msra.mxu0 0.0
    %284 = vmatprep.subr.mxu0 0.0
    %285 = vmatpush1.msra.mxu0 0.0
    %286 = vmatprep.subr.mxu0 0.0
    %287 = vmatpush1.msra.mxu0 0.0
    %288 = vmatprep.subr.mxu0 0.0
    %289 = vmatpush1.msra.mxu0 0.0
    %290 = vmatprep.subr.mxu0 0.0
    %291 = vmatpush1.msra.mxu0 0.0
    %292 = vmatprep.subr.mxu0 0.0
    %293 = vmatpush1.msra.mxu0 0.0
    %294 = vmatprep.subr.mxu0 0.0
    %295 = vmatpush1.msra.mxu0 0.0
    %296 = vmatprep.subr.mxu0 0.0
    %297 = vmatpush1.msra.mxu0 0.0
    %298 = vmatprep.subr.mxu0 0.0
    %299 = vmatpush1.msra.mxu0 0.0
    %300 = vmatprep.subr.mxu0 0.0
    %301 = vmatpush1.msra.mxu0 0.0
    %302 = vmatprep.subr.mxu0 0.0
    %303 = vmatpush1.msra.mxu0 0.0
    %304 = vmatprep.subr.mxu0 0.0
    %305 = vmatpush1.msra.mxu0 0.0
    %306 = vmatprep.subr.mxu0 0.0
    %307 = vmatpush1.msra.mxu0 0.0
    %308 = vmatprep.subr.mxu0 0.0
    %309 = vmatpush1.msra.mxu0 0.0
    %310 = vmatprep.subr.mxu0 0.0
    %311 = vmatpush1.msra.mxu0 0.0
    %312 = vmatprep.subr.mxu0 0.0
    %313 = vmatpush1.msra.mxu0 0.0
    %314 = vmatprep.subr.mxu0 0.0
    %315 = vmatpush1.msra.mxu0 0.0
    %316 = vmatprep.subr.mxu0 0.0
    %317 = vmatpush1.msra.mxu0 0.0
    %318 = vmatprep.subr.mxu0 0.0
    %319 = vmatpush1.msra.mxu0 0.0
    %320 = vmatprep.subr.mxu0 0.0
    %321 = vmatpush1.msra.mxu0 0.0
    %322 = vmatprep.subr.mxu0 0.0
    %323 = vmatpush1.msra.mxu0 0.0
    %324 = vmatprep.subr.mxu0 0.0
    %325 = vmatpush1.msra.mxu0 0.0
    %326 = vmatprep.subr.mxu0 0.0
    %327 = vmatpush1.msra.mxu0 0.0
    %328 = vmatprep.subr.mxu0 0.0
    %329 = vmatpush1.msra.mxu0 0.0
    %330 = vmatprep.subr.mxu0 0.0
    %331 = vmatpush1.msra.mxu0 0.0
    %332 = vmatprep.subr.mxu0 0.0
    %333 = vmatpush1.msra.mxu0 0.0
    %334 = vmatprep.subr.mxu0 0.0
    %335 = vmatpush1.msra.mxu0 0.0
    %336 = vmatprep.subr.mxu0 0.0
    %337 = vmatpush1.msra.mxu0 0.0
    %338 = vmatprep.subr.mxu0 0.0
    %339 = vmatpush1.msra.mxu0 0.0
    %340 = vmatprep.mubr.f32.mxu0 0.0
    %341 = vmatmul.mubr.f32.gmra.mrb[0].mxu0 %v271
    %v342 = vpop.f32.mrb[0].mxu0
    %v343 = vadd.f32 0.0, %v342
    %v344 = vpop.f32.mrb[0].mxu0
    %345 = vdwg.mxu0
    %v346 = vadd.f32 %v264, %v343
    %v347 = vld [vmem:[%s1] sm:$0xff]
    %v348 = vld [vmem:[%s1 + $0x8] sm:$0x3f]
    %s349 = sadd.s32 32, %s20
    %s350 = scalar_lea.vmem %s0, %s349
    %v351 = vld [vmem:[%s350] sm:$0x7f]
    %s352 = sadd.s32 40, %s20
    %s353 = scalar_lea.vmem %s0, %s352
    %v354 = vld [vmem:[%s353] sm:$0x7f]
    %v356 = vsel %vm29, %v354, 0
    %358 = vmatprep.subr.mxu0 0.0
    %359 = vmatpush1.msra.mxu0 %v35
    %360 = vmatprep.subr.mxu0 0.0
    %361 = vmatpush1.msra.mxu0 0.0
    %362 = vmatprep.subr.mxu0 0.0
    %363 = vmatpush1.msra.mxu0 0.0
    %364 = vmatprep.subr.mxu0 0.0
    %365 = vmatpush1.msra.mxu0 0.0
    %366 = vmatprep.subr.mxu0 0.0
    %367 = vmatpush1.msra.mxu0 0.0
    %368 = vmatprep.subr.mxu0 0.0
    %369 = vmatpush1.msra.mxu0 0.0
    %370 = vmatprep.subr.mxu0 0.0
    %371 = vmatpush1.msra.mxu0 0.0
    %372 = vmatprep.subr.mxu0 0.0
    %373 = vmatpush1.msra.mxu0 0.0
    %374 = vmatprep.subr.mxu0 0.0
    %375 = vmatpush1.msra.mxu0 0.0
    %376 = vmatprep.subr.mxu0 0.0
    %377 = vmatpush1.msra.mxu0 0.0
    %378 = vmatprep.subr.mxu0 0.0
    %379 = vmatpush1.msra.mxu0 0.0
    %380 = vmatprep.subr.mxu0 0.0
    %381 = vmatpush1.msra.mxu0 0.0
    %382 = vmatprep.subr.mxu0 0.0
    %383 = vmatpush1.msra.mxu0 0.0
    %384 = vmatprep.subr.mxu0 0.0
    %385 = vmatpush1.msra.mxu0 0.0
    %386 = vmatprep.subr.mxu0 0.0
    %387 = vmatpush1.msra.mxu0 0.0
    %388 = vmatprep.subr.mxu0 0.0
    %389 = vmatpush1.msra.mxu0 0.0
    %390 = vmatprep.subr.mxu0 0.0
    %391 = vmatpush1.msra.mxu0 0.0
    %392 = vmatprep.subr.mxu0 0.0
    %393 = vmatpush1.msra.mxu0 0.0
    %394 = vmatprep.subr.mxu0 0.0
    %395 = vmatpush1.msra.mxu0 0.0
    %396 = vmatprep.subr.mxu0 0.0
    %397 = vmatpush1.msra.mxu0 0.0
    %398 = vmatprep.subr.mxu0 0.0
    %399 = vmatpush1.msra.mxu0 0.0
    %400 = vmatprep.subr.mxu0 0.0
    %401 = vmatpush1.msra.mxu0 0.0
    %402 = vmatprep.subr.mxu0 0.0
    %403 = vmatpush1.msra.mxu0 0.0
    %404 = vmatprep.subr.mxu0 0.0
    %405 = vmatpush1.msra.mxu0 0.0
    %406 = vmatprep.subr.mxu0 0.0
    %407 = vmatpush1.msra.mxu0 0.0
    %408 = vmatprep.subr.mxu0 0.0
    %409 = vmatpush1.msra.mxu0 0.0
    %410 = vmatprep.subr.mxu0 0.0
    %411 = vmatpush1.msra.mxu0 0.0
    %412 = vmatprep.subr.mxu0 0.0
    %413 = vmatpush1.msra.mxu0 0.0
    %414 = vmatprep.subr.mxu0 0.0
    %415 = vmatpush1.msra.mxu0 0.0
    %416 = vmatprep.subr.mxu0 0.0
    %417 = vmatpush1.msra.mxu0 0.0
    %418 = vmatprep.subr.mxu0 0.0
    %419 = vmatpush1.msra.mxu0 0.0
    %420 = vmatprep.subr.mxu0 0.0
    %421 = vmatpush1.msra.mxu0 0.0
    %422 = vmatprep.mubr.f32.mxu0 0.0
    %423 = vmatmul.mubr.f32.gmra.mrb[0].mxu0 %v356
    %v424 = vpop.f32.mrb[0].mxu0
    %v425 = vadd.f32 0.0, %v424
    %v426 = vpop.f32.mrb[0].mxu0
    %427 = vdwg.mxu0
    %v429 = vsel %vm29, %v351, 0
    %431 = vmatprep.subr.mxu0 0.0
    %432 = vmatpush1.msra.mxu0 %v111
    %433 = vmatprep.subr.mxu0 0.0
    %434 = vmatpush1.msra.mxu0 0.0
    %435 = vmatprep.subr.mxu0 0.0
    %436 = vmatpush1.msra.mxu0 0.0
    %437 = vmatprep.subr.mxu0 0.0
    %438 = vmatpush1.msra.mxu0 0.0
    %439 = vmatprep.subr.mxu0 0.0
    %440 = vmatpush1.msra.mxu0 0.0
    %441 = vmatprep.subr.mxu0 0.0
    %442 = vmatpush1.msra.mxu0 0.0
    %443 = vmatprep.subr.mxu0 0.0
    %444 = vmatpush1.msra.mxu0 0.0
    %445 = vmatprep.subr.mxu0 0.0
    %446 = vmatpush1.msra.mxu0 0.0
    %447 = vmatprep.subr.mxu0 0.0
    %448 = vmatpush1.msra.mxu0 0.0
    %449 = vmatprep.subr.mxu0 0.0
    %450 = vmatpush1.msra.mxu0 0.0
    %451 = vmatprep.subr.mxu0 0.0
    %452 = vmatpush1.msra.mxu0 0.0
    %453 = vmatprep.subr.mxu0 0.0
    %454 = vmatpush1.msra.mxu0 0.0
    %455 = vmatprep.subr.mxu0 0.0
    %456 = vmatpush1.msra.mxu0 0.0
    %457 = vmatprep.subr.mxu0 0.0
    %458 = vmatpush1.msra.mxu0 0.0
    %459 = vmatprep.subr.mxu0 0.0
    %460 = vmatpush1.msra.mxu0 0.0
    %461 = vmatprep.subr.mxu0 0.0
    %462 = vmatpush1.msra.mxu0 0.0
    %463 = vmatprep.subr.mxu0 0.0
    %464 = vmatpush1.msra.mxu0 0.0
    %465 = vmatprep.subr.mxu0 0.0
    %466 = vmatpush1.msra.mxu0 0.0
    %467 = vmatprep.subr.mxu0 0.0
    %468 = vmatpush1.msra.mxu0 0.0
    %469 = vmatprep.subr.mxu0 0.0
    %470 = vmatpush1.msra.mxu0 0.0
    %471 = vmatprep.subr.mxu0 0.0
    %472 = vmatpush1.msra.mxu0 0.0
    %473 = vmatprep.subr.mxu0 0.0
    %474 = vmatpush1.msra.mxu0 0.0
    %475 = vmatprep.subr.mxu0 0.0
    %476 = vmatpush1.msra.mxu0 0.0
    %477 = vmatprep.subr.mxu0 0.0
    %478 = vmatpush1.msra.mxu0 0.0
    %479 = vmatprep.subr.mxu0 0.0
    %480 = vmatpush1.msra.mxu0 0.0
    %481 = vmatprep.subr.mxu0 0.0
    %482 = vmatpush1.msra.mxu0 0.0
    %483 = vmatprep.subr.mxu0 0.0
    %484 = vmatpush1.msra.mxu0 0.0
    %485 = vmatprep.subr.mxu0 0.0
    %486 = vmatpush1.msra.mxu0 0.0
    %487 = vmatprep.subr.mxu0 0.0
    %488 = vmatpush1.msra.mxu0 0.0
    %489 = vmatprep.subr.mxu0 0.0
    %490 = vmatpush1.msra.mxu0 0.0
    %491 = vmatprep.subr.mxu0 0.0
    %492 = vmatpush1.msra.mxu0 0.0
    %493 = vmatprep.subr.mxu0 0.0
    %494 = vmatpush1.msra.mxu0 0.0
    %495 = vmatprep.mubr.f32.mxu0 0.0
    %496 = vmatmul.mubr.f32.gmra.mrb[0].mxu0 %v429
    %v497 = vpop.f32.mrb[0].mxu0
    %v498 = vadd.f32 %v425, %v497
    %v499 = vpop.f32.mrb[0].mxu0
    %500 = vdwg.mxu0
    %s501 = sadd.s32 48, %s20
    %s502 = scalar_lea.vmem %s0, %s501
    %v503 = vld [vmem:[%s502] sm:$0x7f]
    %v505 = vsel %vm29, %v503, 0
    %507 = vmatprep.subr.mxu0 0.0
    %508 = vmatpush1.msra.mxu0 %v192
    %509 = vmatprep.subr.mxu0 0.0
    %510 = vmatpush1.msra.mxu0 0.0
    %511 = vmatprep.subr.mxu0 0.0
    %512 = vmatpush1.msra.mxu0 0.0
    %513 = vmatprep.subr.mxu0 0.0
    %514 = vmatpush1.msra.mxu0 0.0
    %515 = vmatprep.subr.mxu0 0.0
    %516 = vmatpush1.msra.mxu0 0.0
    %517 = vmatprep.subr.mxu0 0.0
    %518 = vmatpush1.msra.mxu0 0.0
    %519 = vmatprep.subr.mxu0 0.0
    %520 = vmatpush1.msra.mxu0 0.0
    %521 = vmatprep.subr.mxu0 0.0
    %522 = vmatpush1.msra.mxu0 0.0
    %523 = vmatprep.subr.mxu0 0.0
    %524 = vmatpush1.msra.mxu0 0.0
    %525 = vmatprep.subr.mxu0 0.0
    %526 = vmatpush1.msra.mxu0 0.0
    %527 = vmatprep.subr.mxu0 0.0
    %528 = vmatpush1.msra.mxu0 0.0
    %529 = vmatprep.subr.mxu0 0.0
    %530 = vmatpush1.msra.mxu0 0.0
    %531 = vmatprep.subr.mxu0 0.0
    %532 = vmatpush1.msra.mxu0 0.0
    %533 = vmatprep.subr.mxu0 0.0
    %534 = vmatpush1.msra.mxu0 0.0
    %535 = vmatprep.subr.mxu0 0.0
    %536 = vmatpush1.msra.mxu0 0.0
    %537 = vmatprep.subr.mxu0 0.0
    %538 = vmatpush1.msra.mxu0 0.0
    %539 = vmatprep.subr.mxu0 0.0
    %540 = vmatpush1.msra.mxu0 0.0
    %541 = vmatprep.subr.mxu0 0.0
    %542 = vmatpush1.msra.mxu0 0.0
    %543 = vmatprep.subr.mxu0 0.0
    %544 = vmatpush1.msra.mxu0 0.0
    %545 = vmatprep.subr.mxu0 0.0
    %546 = vmatpush1.msra.mxu0 0.0
    %547 = vmatprep.subr.mxu0 0.0
    %548 = vmatpush1.msra.mxu0 0.0
    %549 = vmatprep.subr.mxu0 0.0
    %550 = vmatpush1.msra.mxu0 0.0
    %551 = vmatprep.subr.mxu0 0.0
    %552 = vmatpush1.msra.mxu0 0.0
    %553 = vmatprep.subr.mxu0 0.0
    %554 = vmatpush1.msra.mxu0 0.0
    %555 = vmatprep.subr.mxu0 0.0
    %556 = vmatpush1.msra.mxu0 0.0
    %557 = vmatprep.subr.mxu0 0.0
    %558 = vmatpush1.msra.mxu0 0.0
    %559 = vmatprep.subr.mxu0 0.0
    %560 = vmatpush1.msra.mxu0 0.0
    %561 = vmatprep.subr.mxu0 0.0
    %562 = vmatpush1.msra.mxu0 0.0
    %563 = vmatprep.subr.mxu0 0.0
    %564 = vmatpush1.msra.mxu0 0.0
    %565 = vmatprep.subr.mxu0 0.0
    %566 = vmatpush1.msra.mxu0 0.0
    %567 = vmatprep.subr.mxu0 0.0
    %568 = vmatpush1.msra.mxu0 0.0
    %569 = vmatprep.subr.mxu0 0.0
    %570 = vmatpush1.msra.mxu0 0.0
    %571 = vmatprep.mubr.f32.mxu0 0.0
    %572 = vmatmul.mubr.f32.gmra.mrb[0].mxu0 %v505
    %v573 = vpop.f32.mrb[0].mxu0
    %v574 = vadd.f32 0.0, %v573
    %v575 = vpop.f32.mrb[0].mxu0
    %576 = vdwg.mxu0
    %v577 = vadd.f32 %v498, %v574
    %s578 = sadd.s32 56, %s20
    %s579 = scalar_lea.vmem %s0, %s578
    %v580 = vld [vmem:[%s579] sm:$0x7f]
    %v582 = vsel %vm29, %v580, 0
    %584 = vmatprep.subr.mxu0 0.0
    %585 = vmatpush1.msra.mxu0 %v274
    %586 = vmatprep.subr.mxu0 0.0
    %587 = vmatpush1.msra.mxu0 0.0
    %588 = vmatprep.subr.mxu0 0.0
    %589 = vmatpush1.msra.mxu0 0.0
    %590 = vmatprep.subr.mxu0 0.0
    %591 = vmatpush1.msra.mxu0 0.0
    %592 = vmatprep.subr.mxu0 0.0
    %593 = vmatpush1.msra.mxu0 0.0
    %594 = vmatprep.subr.mxu0 0.0
    %595 = vmatpush1.msra.mxu0 0.0
    %596 = vmatprep.subr.mxu0 0.0
    %597 = vmatpush1.msra.mxu0 0.0
    %598 = vmatprep.subr.mxu0 0.0
    %599 = vmatpush1.msra.mxu0 0.0
    %600 = vmatprep.subr.mxu0 0.0
    %601 = vmatpush1.msra.mxu0 0.0
    %602 = vmatprep.subr.mxu0 0.0
    %603 = vmatpush1.msra.mxu0 0.0
    %604 = vmatprep.subr.mxu0 0.0
    %605 = vmatpush1.msra.mxu0 0.0
    %606 = vmatprep.subr.mxu0 0.0
    %607 = vmatpush1.msra.mxu0 0.0
    %608 = vmatprep.subr.mxu0 0.0
    %609 = vmatpush1.msra.mxu0 0.0
    %610 = vmatprep.subr.mxu0 0.0
    %611 = vmatpush1.msra.mxu0 0.0
    %612 = vmatprep.subr.mxu0 0.0
    %613 = vmatpush1.msra.mxu0 0.0
    %614 = vmatprep.subr.mxu0 0.0
    %615 = vmatpush1.msra.mxu0 0.0
    %616 = vmatprep.subr.mxu0 0.0
    %617 = vmatpush1.msra.mxu0 0.0
    %618 = vmatprep.subr.mxu0 0.0
    %619 = vmatpush1.msra.mxu0 0.0
    %620 = vmatprep.subr.mxu0 0.0
    %621 = vmatpush1.msra.mxu0 0.0
    %622 = vmatprep.subr.mxu0 0.0
    %623 = vmatpush1.msra.mxu0 0.0
    %624 = vmatprep.subr.mxu0 0.0
    %625 = vmatpush1.msra.mxu0 0.0
    %626 = vmatprep.subr.mxu0 0.0
    %627 = vmatpush1.msra.mxu0 0.0
    %628 = vmatprep.subr.mxu0 0.0
    %629 = vmatpush1.msra.mxu0 0.0
    %630 = vmatprep.subr.mxu0 0.0
    %631 = vmatpush1.msra.mxu0 0.0
    %632 = vmatprep.subr.mxu0 0.0
    %633 = vmatpush1.msra.mxu0 0.0
    %634 = vmatprep.subr.mxu0 0.0
    %635 = vmatpush1.msra.mxu0 0.0
    %636 = vmatprep.subr.mxu0 0.0
    %637 = vmatpush1.msra.mxu0 0.0
    %638 = vmatprep.subr.mxu0 0.0
    %639 = vmatpush1.msra.mxu0 0.0
    %640 = vmatprep.subr.mxu0 0.0
    %641 = vmatpush1.msra.mxu0 0.0
    %642 = vmatprep.subr.mxu0 0.0
    %643 = vmatpush1.msra.mxu0 0.0
    %644 = vmatprep.subr.mxu0 0.0
    %645 = vmatpush1.msra.mxu0 0.0
    %646 = vmatprep.subr.mxu0 0.0
    %647 = vmatpush1.msra.mxu0 0.0
    %648 = vmatprep.mubr.f32.mxu0 0.0
    %649 = vmatmul.mubr.f32.gmra.mrb[0].mxu0 %v582
    %v650 = vpop.f32.mrb[0].mxu0
    %v651 = vadd.f32 0.0, %v650
    %v652 = vpop.f32.mrb[0].mxu0
    %653 = vdwg.mxu0
    %v654 = vadd.f32 %v577, %v651
    %s655 = scalar_lea.vmem %s1, 16
    %v656 = vld [vmem:[%s655] sm:$0xff]
    %v657 = vld [vmem:[%s655 + $0x8] sm:$0x3f]
    %v659 = vsel %vm29, %v656, 0
    %v662 = vsel %vm29, %v657, 0
    %v665 = vsel %vm33, %v654, 0
    %667 = vmatprep.subr.mxu0 0.0
    %668 = vmatpush1.msra.mxu0 %v665
    %669 = vmatprep.subr.mxu0 0.0
    %670 = vmatpush1.msra.mxu0 0.0
    %671 = vmatprep.subr.mxu0 0.0
    %672 = vmatpush1.msra.mxu0 0.0
    %673 = vmatprep.subr.mxu0 0.0
    %674 = vmatpush1.msra.mxu0 0.0
    %675 = vmatprep.subr.mxu0 0.0
    %676 = vmatpush1.msra.mxu0 0.0
    %677 = vmatprep.subr.mxu0 0.0
    %678 = vmatpush1.msra.mxu0 0.0
    %679 = vmatprep.subr.mxu0 0.0
    %680 = vmatpush1.msra.mxu0 0.0
    %681 = vmatprep.subr.mxu0 0.0
    %682 = vmatpush1.msra.mxu0 0.0
    %683 = vmatprep.subr.mxu0 0.0
    %684 = vmatpush1.msra.mxu0 0.0
    %685 = vmatprep.subr.mxu0 0.0
    %686 = vmatpush1.msra.mxu0 0.0
    %687 = vmatprep.subr.mxu0 0.0
    %688 = vmatpush1.msra.mxu0 0.0
    %689 = vmatprep.subr.mxu0 0.0
    %690 = vmatpush1.msra.mxu0 0.0
    %691 = vmatprep.subr.mxu0 0.0
    %692 = vmatpush1.msra.mxu0 0.0
    %693 = vmatprep.subr.mxu0 0.0
    %694 = vmatpush1.msra.mxu0 0.0
    %695 = vmatprep.subr.mxu0 0.0
    %696 = vmatpush1.msra.mxu0 0.0
    %697 = vmatprep.subr.mxu0 0.0
    %698 = vmatpush1.msra.mxu0 0.0
    %699 = vmatprep.subr.mxu0 0.0
    %700 = vmatpush1.msra.mxu0 0.0
    %701 = vmatprep.subr.mxu0 0.0
    %702 = vmatpush1.msra.mxu0 0.0
    %703 = vmatprep.subr.mxu0 0.0
    %704 = vmatpush1.msra.mxu0 0.0
    %705 = vmatprep.subr.mxu0 0.0
    %706 = vmatpush1.msra.mxu0 0.0
    %707 = vmatprep.subr.mxu0 0.0
    %708 = vmatpush1.msra.mxu0 0.0
    %709 = vmatprep.subr.mxu0 0.0
    %710 = vmatpush1.msra.mxu0 0.0
    %711 = vmatprep.subr.mxu0 0.0
    %712 = vmatpush1.msra.mxu0 0.0
    %713 = vmatprep.subr.mxu0 0.0
    %714 = vmatpush1.msra.mxu0 0.0
    %715 = vmatprep.subr.mxu0 0.0
    %716 = vmatpush1.msra.mxu0 0.0
    %717 = vmatprep.subr.mxu0 0.0
    %718 = vmatpush1.msra.mxu0 0.0
    %719 = vmatprep.subr.mxu0 0.0
    %720 = vmatpush1.msra.mxu0 0.0
    %721 = vmatprep.subr.mxu0 0.0
    %722 = vmatpush1.msra.mxu0 0.0
    %723 = vmatprep.subr.mxu0 0.0
    %724 = vmatpush1.msra.mxu0 0.0
    %725 = vmatprep.subr.mxu0 0.0
    %726 = vmatpush1.msra.mxu0 0.0
    %727 = vmatprep.subr.mxu0 0.0
    %728 = vmatpush1.msra.mxu0 0.0
    %729 = vmatprep.subr.mxu0 0.0
    %730 = vmatpush1.msra.mxu0 0.0
    %731 = vmatprep.mubr.f32.mxu0 0.0
    %732 = vmatmul.mubr.f32.gmra.mrb[0].mxu0 %v659
    %v733 = vpop.f32.mrb[0].mxu0
    %v734 = vadd.f32 0.0, %v733
    %v735 = vpop.f32.mrb[0].mxu0
    %736 = vmatprep.mubr.f32.mxu0 0.0
    %737 = vmatmul.mubr.f32.gmra.mrb[0].mxu0 %v662
    %v738 = vpop.f32.mrb[0].mxu0
    %v739 = vadd.f32 0.0, %v738
    %v740 = vpop.f32.mrb[0].mxu0
    %741 = vdwg.mxu0
    %v743 = vsel %vm29, %v347, 0
    %v746 = vsel %vm29, %v348, 0
    %v749 = vsel %vm33, %v346, 0
    %751 = vmatprep.subr.mxu0 0.0
    %752 = vmatpush1.msra.mxu0 %v749
    %753 = vmatprep.subr.mxu0 0.0
    %754 = vmatpush1.msra.mxu0 0.0
    %755 = vmatprep.subr.mxu0 0.0
    %756 = vmatpush1.msra.mxu0 0.0
    %757 = vmatprep.subr.mxu0 0.0
    %758 = vmatpush1.msra.mxu0 0.0
    %759 = vmatprep.subr.mxu0 0.0
    %760 = vmatpush1.msra.mxu0 0.0
    %761 = vmatprep.subr.mxu0 0.0
    %762 = vmatpush1.msra.mxu0 0.0
    %763 = vmatprep.subr.mxu0 0.0
    %764 = vmatpush1.msra.mxu0 0.0
    %765 = vmatprep.subr.mxu0 0.0
    %766 = vmatpush1.msra.mxu0 0.0
    %767 = vmatprep.subr.mxu0 0.0
    %768 = vmatpush1.msra.mxu0 0.0
    %769 = vmatprep.subr.mxu0 0.0
    %770 = vmatpush1.msra.mxu0 0.0
    %771 = vmatprep.subr.mxu0 0.0
    %772 = vmatpush1.msra.mxu0 0.0
    %773 = vmatprep.subr.mxu0 0.0
    %774 = vmatpush1.msra.mxu0 0.0
    %775 = vmatprep.subr.mxu0 0.0
    %776 = vmatpush1.msra.mxu0 0.0
    %777 = vmatprep.subr.mxu0 0.0
    %778 = vmatpush1.msra.mxu0 0.0
    %779 = vmatprep.subr.mxu0 0.0
    %780 = vmatpush1.msra.mxu0 0.0
    %781 = vmatprep.subr.mxu0 0.0
    %782 = vmatpush1.msra.mxu0 0.0
    %783 = vmatprep.subr.mxu0 0.0
    %784 = vmatpush1.msra.mxu0 0.0
    %785 = vmatprep.subr.mxu0 0.0
    %786 = vmatpush1.msra.mxu0 0.0
    %787 = vmatprep.subr.mxu0 0.0
    %788 = vmatpush1.msra.mxu0 0.0
    %789 = vmatprep.subr.mxu0 0.0
    %790 = vmatpush1.msra.mxu0 0.0
    %791 = vmatprep.subr.mxu0 0.0
    %792 = vmatpush1.msra.mxu0 0.0
    %793 = vmatprep.subr.mxu0 0.0
    %794 = vmatpush1.msra.mxu0 0.0
    %795 = vmatprep.subr.mxu0 0.0
    %796 = vmatpush1.msra.mxu0 0.0
    %797 = vmatprep.subr.mxu0 0.0
    %798 = vmatpush1.msra.mxu0 0.0
    %799 = vmatprep.subr.mxu0 0.0
    %800 = vmatpush1.msra.mxu0 0.0
    %801 = vmatprep.subr.mxu0 0.0
    %802 = vmatpush1.msra.mxu0 0.0
    %803 = vmatprep.subr.mxu0 0.0
    %804 = vmatpush1.msra.mxu0 0.0
    %805 = vmatprep.subr.mxu0 0.0
    %806 = vmatpush1.msra.mxu0 0.0
    %807 = vmatprep.subr.mxu0 0.0
    %808 = vmatpush1.msra.mxu0 0.0
    %809 = vmatprep.subr.mxu0 0.0
    %810 = vmatpush1.msra.mxu0 0.0
    %811 = vmatprep.subr.mxu0 0.0
    %812 = vmatpush1.msra.mxu0 0.0
    %813 = vmatprep.subr.mxu0 0.0
    %814 = vmatpush1.msra.mxu0 0.0
    %815 = vmatprep.mubr.f32.mxu0 0.0
    %816 = vmatmul.mubr.f32.gmra.mrb[0].mxu0 %v743
    %v817 = vpop.f32.mrb[0].mxu0
    %v818 = vadd.f32 %v734, %v817
    %v819 = vpop.f32.mrb[0].mxu0
    %820 = vmatprep.mubr.f32.mxu0 0.0
    %821 = vmatmul.mubr.f32.gmra.mrb[0].mxu0 %v746
    %v822 = vpop.f32.mrb[0].mxu0
    %v823 = vadd.f32 %v739, %v822
    %v824 = vpop.f32.mrb[0].mxu0
    %825 = vdwg.mxu0
    %s826 = sadd.s32 64, %s20
    %s827 = scalar_lea.vmem %s0, %s826
    %v828 = vld [vmem:[%s827] sm:$0x7f]
    %s829 = sadd.s32 72, %s20
    %s830 = scalar_lea.vmem %s0, %s829
    %v831 = vld [vmem:[%s830] sm:$0x7f]
    %v833 = vsel %vm29, %v831, 0
    %835 = vmatprep.subr.mxu0 0.0
    %836 = vmatpush1.msra.mxu0 %v35
    %837 = vmatprep.subr.mxu0 0.0
    %838 = vmatpush1.msra.mxu0 0.0
    %839 = vmatprep.subr.mxu0 0.0
    %840 = vmatpush1.msra.mxu0 0.0
    %841 = vmatprep.subr.mxu0 0.0
    %842 = vmatpush1.msra.mxu0 0.0
    %843 = vmatprep.subr.mxu0 0.0
    %844 = vmatpush1.msra.mxu0 0.0
    %845 = vmatprep.subr.mxu0 0.0
    %846 = vmatpush1.msra.mxu0 0.0
    %847 = vmatprep.subr.mxu0 0.0
    %848 = vmatpush1.msra.mxu0 0.0
    %849 = vmatprep.subr.mxu0 0.0
    %850 = vmatpush1.msra.mxu0 0.0
    %851 = vmatprep.subr.mxu0 0.0
    %852 = vmatpush1.msra.mxu0 0.0
    %853 = vmatprep.subr.mxu0 0.0
    %854 = vmatpush1.msra.mxu0 0.0
    %855 = vmatprep.subr.mxu0 0.0
    %856 = vmatpush1.msra.mxu0 0.0
    %857 = vmatprep.subr.mxu0 0.0
    %858 = vmatpush1.msra.mxu0 0.0
    %859 = vmatprep.subr.mxu0 0.0
    %860 = vmatpush1.msra.mxu0 0.0
    %861 = vmatprep.subr.mxu0 0.0
    %862 = vmatpush1.msra.mxu0 0.0
    %863 = vmatprep.subr.mxu0 0.0
    %864 = vmatpush1.msra.mxu0 0.0
    %865 = vmatprep.subr.mxu0 0.0
    %866 = vmatpush1.msra.mxu0 0.0
    %867 = vmatprep.subr.mxu0 0.0
    %868 = vmatpush1.msra.mxu0 0.0
    %869 = vmatprep.subr.mxu0 0.0
    %870 = vmatpush1.msra.mxu0 0.0
    %871 = vmatprep.subr.mxu0 0.0
    %872 = vmatpush1.msra.mxu0 0.0
    %873 = vmatprep.subr.mxu0 0.0
    %874 = vmatpush1.msra.mxu0 0.0
    %875 = vmatprep.subr.mxu0 0.0
    %876 = vmatpush1.msra.mxu0 0.0
    %877 = vmatprep.subr.mxu0 0.0
    %878 = vmatpush1.msra.mxu0 0.0
    %879 = vmatprep.subr.mxu0 0.0
    %880 = vmatpush1.msra.mxu0 0.0
    %881 = vmatprep.subr.mxu0 0.0
    %882 = vmatpush1.msra.mxu0 0.0
    %883 = vmatprep.subr.mxu0 0.0
    %884 = vmatpush1.msra.mxu0 0.0
    %885 = vmatprep.subr.mxu0 0.0
    %886 = vmatpush1.msra.mxu0 0.0
    %887 = vmatprep.subr.mxu0 0.0
    %888 = vmatpush1.msra.mxu0 0.0
    %889 = vmatprep.subr.mxu0 0.0
    %890 = vmatpush1.msra.mxu0 0.0
    %891 = vmatprep.subr.mxu0 0.0
    %892 = vmatpush1.msra.mxu0 0.0
    %893 = vmatprep.subr.mxu0 0.0
    %894 = vmatpush1.msra.mxu0 0.0
    %895 = vmatprep.subr.mxu0 0.0
    %896 = vmatpush1.msra.mxu0 0.0
    %897 = vmatprep.subr.mxu0 0.0
    %898 = vmatpush1.msra.mxu0 0.0
    %899 = vmatprep.mubr.f32.mxu0 0.0
    %900 = vmatmul.mubr.f32.gmra.mrb[0].mxu0 %v833
    %v901 = vpop.f32.mrb[0].mxu0
    %v902 = vadd.f32 0.0, %v901
    %v903 = vpop.f32.mrb[0].mxu0
    %904 = vdwg.mxu0
    %v906 = vsel %vm29, %v828, 0
    %908 = vmatprep.subr.mxu0 0.0
    %909 = vmatpush1.msra.mxu0 %v111
    %910 = vmatprep.subr.mxu0 0.0
    %911 = vmatpush1.msra.mxu0 0.0
    %912 = vmatprep.subr.mxu0 0.0
    %913 = vmatpush1.msra.mxu0 0.0
    %914 = vmatprep.subr.mxu0 0.0
    %915 = vmatpush1.msra.mxu0 0.0
    %916 = vmatprep.subr.mxu0 0.0
    %917 = vmatpush1.msra.mxu0 0.0
    %918 = vmatprep.subr.mxu0 0.0
    %919 = vmatpush1.msra.mxu0 0.0
    %920 = vmatprep.subr.mxu0 0.0
    %921 = vmatpush1.msra.mxu0 0.0
    %922 = vmatprep.subr.mxu0 0.0
    %923 = vmatpush1.msra.mxu0 0.0
    %924 = vmatprep.subr.mxu0 0.0
    %925 = vmatpush1.msra.mxu0 0.0
    %926 = vmatprep.subr.mxu0 0.0
    %927 = vmatpush1.msra.mxu0 0.0
    %928 = vmatprep.subr.mxu0 0.0
    %929 = vmatpush1.msra.mxu0 0.0
    %930 = vmatprep.subr.mxu0 0.0
    %931 = vmatpush1.msra.mxu0 0.0
    %932 = vmatprep.subr.mxu0 0.0
    %933 = vmatpush1.msra.mxu0 0.0
    %934 = vmatprep.subr.mxu0 0.0
    %935 = vmatpush1.msra.mxu0 0.0
    %936 = vmatprep.subr.mxu0 0.0
    %937 = vmatpush1.msra.mxu0 0.0
    %938 = vmatprep.subr.mxu0 0.0
    %939 = vmatpush1.msra.mxu0 0.0
    %940 = vmatprep.subr.mxu0 0.0
    %941 = vmatpush1.msra.mxu0 0.0
    %942 = vmatprep.subr.mxu0 0.0
    %943 = vmatpush1.msra.mxu0 0.0
    %944 = vmatprep.subr.mxu0 0.0
    %945 = vmatpush1.msra.mxu0 0.0
    %946 = vmatprep.subr.mxu0 0.0
    %947 = vmatpush1.msra.mxu0 0.0
    %948 = vmatprep.subr.mxu0 0.0
    %949 = vmatpush1.msra.mxu0 0.0
    %950 = vmatprep.subr.mxu0 0.0
    %951 = vmatpush1.msra.mxu0 0.0
    %952 = vmatprep.subr.mxu0 0.0
    %953 = vmatpush1.msra.mxu0 0.0
    %954 = vmatprep.subr.mxu0 0.0
    %955 = vmatpush1.msra.mxu0 0.0
    %956 = vmatprep.subr.mxu0 0.0
    %957 = vmatpush1.msra.mxu0 0.0
    %958 = vmatprep.subr.mxu0 0.0
    %959 = vmatpush1.msra.mxu0 0.0
    %960 = vmatprep.subr.mxu0 0.0
    %961 = vmatpush1.msra.mxu0 0.0
    %962 = vmatprep.subr.mxu0 0.0
    %963 = vmatpush1.msra.mxu0 0.0
    %964 = vmatprep.subr.mxu0 0.0
    %965 = vmatpush1.msra.mxu0 0.0
    %966 = vmatprep.subr.mxu0 0.0
    %967 = vmatpush1.msra.mxu0 0.0
    %968 = vmatprep.subr.mxu0 0.0
    %969 = vmatpush1.msra.mxu0 0.0
    %970 = vmatprep.subr.mxu0 0.0
    %971 = vmatpush1.msra.mxu0 0.0
    %972 = vmatprep.mubr.f32.mxu0 0.0
    %973 = vmatmul.mubr.f32.gmra.mrb[0].mxu0 %v906
    %v974 = vpop.f32.mrb[0].mxu0
    %v975 = vadd.f32 %v902, %v974
    %v976 = vpop.f32.mrb[0].mxu0
    %977 = vdwg.mxu0
    %s978 = sadd.s32 80, %s20
    %s979 = scalar_lea.vmem %s0, %s978
    %v980 = vld [vmem:[%s979] sm:$0x7f]
    %v982 = vsel %vm29, %v980, 0
    %984 = vmatprep.subr.mxu0 0.0
    %985 = vmatpush1.msra.mxu0 %v192
    %986 = vmatprep.subr.mxu0 0.0
    %987 = vmatpush1.msra.mxu0 0.0
    %988 = vmatprep.subr.mxu0 0.0
    %989 = vmatpush1.msra.mxu0 0.0
    %990 = vmatprep.subr.mxu0 0.0
    %991 = vmatpush1.msra.mxu0 0.0
    %992 = vmatprep.subr.mxu0 0.0
    %993 = vmatpush1.msra.mxu0 0.0
    %994 = vmatprep.subr.mxu0 0.0
    %995 = vmatpush1.msra.mxu0 0.0
    %996 = vmatprep.subr.mxu0 0.0
    %997 = vmatpush1.msra.mxu0 0.0
    %998 = vmatprep.subr.mxu0 0.0
    %999 = vmatpush1.msra.mxu0 0.0
    %1000 = vmatprep.subr.mxu0 0.0
    %1001 = vmatpush1.msra.mxu0 0.0
    %1002 = vmatprep.subr.mxu0 0.0
    %1003 = vmatpush1.msra.mxu0 0.0
    %1004 = vmatprep.subr.mxu0 0.0
    %1005 = vmatpush1.msra.mxu0 0.0
    %1006 = vmatprep.subr.mxu0 0.0
    %1007 = vmatpush1.msra.mxu0 0.0
    %1008 = vmatprep.subr.mxu0 0.0
    %1009 = vmatpush1.msra.mxu0 0.0
    %1010 = vmatprep.subr.mxu0 0.0
    %1011 = vmatpush1.msra.mxu0 0.0
    %1012 = vmatprep.subr.mxu0 0.0
    %1013 = vmatpush1.msra.mxu0 0.0
    %1014 = vmatprep.subr.mxu0 0.0
    %1015 = vmatpush1.msra.mxu0 0.0
    %1016 = vmatprep.subr.mxu0 0.0
    %1017 = vmatpush1.msra.mxu0 0.0
    %1018 = vmatprep.subr.mxu0 0.0
    %1019 = vmatpush1.msra.mxu0 0.0
    %1020 = vmatprep.subr.mxu0 0.0
    %1021 = vmatpush1.msra.mxu0 0.0
    %1022 = vmatprep.subr.mxu0 0.0
    %1023 = vmatpush1.msra.mxu0 0.0
    %1024 = vmatprep.subr.mxu0 0.0
    %1025 = vmatpush1.msra.mxu0 0.0
    %1026 = vmatprep.subr.mxu0 0.0
    %1027 = vmatpush1.msra.mxu0 0.0
    %1028 = vmatprep.subr.mxu0 0.0
    %1029 = vmatpush1.msra.mxu0 0.0
    %1030 = vmatprep.subr.mxu0 0.0
    %1031 = vmatpush1.msra.mxu0 0.0
    %1032 = vmatprep.subr.mxu0 0.0
    %1033 = vmatpush1.msra.mxu0 0.0
    %1034 = vmatprep.subr.mxu0 0.0
    %1035 = vmatpush1.msra.mxu0 0.0
    %1036 = vmatprep.subr.mxu0 0.0
    %1037 = vmatpush1.msra.mxu0 0.0
    %1038 = vmatprep.subr.mxu0 0.0
    %1039 = vmatpush1.msra.mxu0 0.0
    %1040 = vmatprep.subr.mxu0 0.0
    %1041 = vmatpush1.msra.mxu0 0.0
    %1042 = vmatprep.subr.mxu0 0.0
    %1043 = vmatpush1.msra.mxu0 0.0
    %1044 = vmatprep.subr.mxu0 0.0
    %1045 = vmatpush1.msra.mxu0 0.0
    %1046 = vmatprep.subr.mxu0 0.0
    %1047 = vmatpush1.msra.mxu0 0.0
    %1048 = vmatprep.mubr.f32.mxu0 0.0
    %1049 = vmatmul.mubr.f32.gmra.mrb[0].mxu0 %v982
    %v1050 = vpop.f32.mrb[0].mxu0
    %v1051 = vadd.f32 0.0, %v1050
    %v1052 = vpop.f32.mrb[0].mxu0
    %1053 = vdwg.mxu0
    %v1054 = vadd.f32 %v975, %v1051
    %s1055 = sadd.s32 88, %s20
    %s1056 = scalar_lea.vmem %s0, %s1055
    %v1057 = vld [vmem:[%s1056] sm:$0x7f]
    %v1059 = vsel %vm29, %v1057, 0
    %1061 = vmatprep.subr.mxu0 0.0
    %1062 = vmatpush1.msra.mxu0 %v274
    %1063 = vmatprep.subr.mxu0 0.0
    %1064 = vmatpush1.msra.mxu0 0.0
    %1065 = vmatprep.subr.mxu0 0.0
    %1066 = vmatpush1.msra.mxu0 0.0
    %1067 = vmatprep.subr.mxu0 0.0
    %1068 = vmatpush1.msra.mxu0 0.0
    %1069 = vmatprep.subr.mxu0 0.0
    %1070 = vmatpush1.msra.mxu0 0.0
    %1071 = vmatprep.subr.mxu0 0.0
    %1072 = vmatpush1.msra.mxu0 0.0
    %1073 = vmatprep.subr.mxu0 0.0
    %1074 = vmatpush1.msra.mxu0 0.0
    %1075 = vmatprep.subr.mxu0 0.0
    %1076 = vmatpush1.msra.mxu0 0.0
    %1077 = vmatprep.subr.mxu0 0.0
    %1078 = vmatpush1.msra.mxu0 0.0
    %1079 = vmatprep.subr.mxu0 0.0
    %1080 = vmatpush1.msra.mxu0 0.0
    %1081 = vmatprep.subr.mxu0 0.0
    %1082 = vmatpush1.msra.mxu0 0.0
    %1083 = vmatprep.subr.mxu0 0.0
    %1084 = vmatpush1.msra.mxu0 0.0
    %1085 = vmatprep.subr.mxu0 0.0
    %1086 = vmatpush1.msra.mxu0 0.0
    %1087 = vmatprep.subr.mxu0 0.0
    %1088 = vmatpush1.msra.mxu0 0.0
    %1089 = vmatprep.subr.mxu0 0.0
    %1090 = vmatpush1.msra.mxu0 0.0
    %1091 = vmatprep.subr.mxu0 0.0
    %1092 = vmatpush1.msra.mxu0 0.0
    %1093 = vmatprep.subr.mxu0 0.0
    %1094 = vmatpush1.msra.mxu0 0.0
    %1095 = vmatprep.subr.mxu0 0.0
    %1096 = vmatpush1.msra.mxu0 0.0
    %1097 = vmatprep.subr.mxu0 0.0
    %1098 = vmatpush1.msra.mxu0 0.0
    %1099 = vmatprep.subr.mxu0 0.0
    %1100 = vmatpush1.msra.mxu0 0.0
    %1101 = vmatprep.subr.mxu0 0.0
    %1102 = vmatpush1.msra.mxu0 0.0
    %1103 = vmatprep.subr.mxu0 0.0
    %1104 = vmatpush1.msra.mxu0 0.0
    %1105 = vmatprep.subr.mxu0 0.0
    %1106 = vmatpush1.msra.mxu0 0.0
    %1107 = vmatprep.subr.mxu0 0.0
    %1108 = vmatpush1.msra.mxu0 0.0
    %1109 = vmatprep.subr.mxu0 0.0
    %1110 = vmatpush1.msra.mxu0 0.0
    %1111 = vmatprep.subr.mxu0 0.0
    %1112 = vmatpush1.msra.mxu0 0.0
    %1113 = vmatprep.subr.mxu0 0.0
    %1114 = vmatpush1.msra.mxu0 0.0
    %1115 = vmatprep.subr.mxu0 0.0
    %1116 = vmatpush1.msra.mxu0 0.0
    %1117 = vmatprep.subr.mxu0 0.0
    %1118 = vmatpush1.msra.mxu0 0.0
    %1119 = vmatprep.subr.mxu0 0.0
    %1120 = vmatpush1.msra.mxu0 0.0
    %1121 = vmatprep.subr.mxu0 0.0
    %1122 = vmatpush1.msra.mxu0 0.0
    %1123 = vmatprep.subr.mxu0 0.0
    %1124 = vmatpush1.msra.mxu0 0.0
    %1125 = vmatprep.mubr.f32.mxu0 0.0
    %1126 = vmatmul.mubr.f32.gmra.mrb[0].mxu0 %v1059
    %v1127 = vpop.f32.mrb[0].mxu0
    %v1128 = vadd.f32 0.0, %v1127
    %v1129 = vpop.f32.mrb[0].mxu0
    %1130 = vdwg.mxu0
    %v1131 = vadd.f32 %v1054, %v1128
    %s1132 = scalar_lea.vmem %s1, 32
    %v1133 = vld [vmem:[%s1132] sm:$0xff]
    %v1134 = vld [vmem:[%s1132 + $0x8] sm:$0x3f]
    %v1136 = vsel %vm29, %v1133, 0
    %v1139 = vsel %vm29, %v1134, 0
    %v1142 = vsel %vm33, %v1131, 0
    %1144 = vmatprep.subr.mxu0 0.0
    %1145 = vmatpush1.msra.mxu0 %v1142
    %1146 = vmatprep.subr.mxu0 0.0
    %1147 = vmatpush1.msra.mxu0 0.0
    %1148 = vmatprep.subr.mxu0 0.0
    %1149 = vmatpush1.msra.mxu0 0.0
    %1150 = vmatprep.subr.mxu0 0.0
    %1151 = vmatpush1.msra.mxu0 0.0
    %1152 = vmatprep.subr.mxu0 0.0
    %1153 = vmatpush1.msra.mxu0 0.0
    %1154 = vmatprep.subr.mxu0 0.0
    %1155 = vmatpush1.msra.mxu0 0.0
    %1156 = vmatprep.subr.mxu0 0.0
    %1157 = vmatpush1.msra.mxu0 0.0
    %1158 = vmatprep.subr.mxu0 0.0
    %1159 = vmatpush1.msra.mxu0 0.0
    %1160 = vmatprep.subr.mxu0 0.0
    %1161 = vmatpush1.msra.mxu0 0.0
    %1162 = vmatprep.subr.mxu0 0.0
    %1163 = vmatpush1.msra.mxu0 0.0
    %1164 = vmatprep.subr.mxu0 0.0
    %1165 = vmatpush1.msra.mxu0 0.0
    %1166 = vmatprep.subr.mxu0 0.0
    %1167 = vmatpush1.msra.mxu0 0.0
    %1168 = vmatprep.subr.mxu0 0.0
    %1169 = vmatpush1.msra.mxu0 0.0
    %1170 = vmatprep.subr.mxu0 0.0
    %1171 = vmatpush1.msra.mxu0 0.0
    %1172 = vmatprep.subr.mxu0 0.0
    %1173 = vmatpush1.msra.mxu0 0.0
    %1174 = vmatprep.subr.mxu0 0.0
    %1175 = vmatpush1.msra.mxu0 0.0
    %1176 = vmatprep.subr.mxu0 0.0
    %1177 = vmatpush1.msra.mxu0 0.0
    %1178 = vmatprep.subr.mxu0 0.0
    %1179 = vmatpush1.msra.mxu0 0.0
    %1180 = vmatprep.subr.mxu0 0.0
    %1181 = vmatpush1.msra.mxu0 0.0
    %1182 = vmatprep.subr.mxu0 0.0
    %1183 = vmatpush1.msra.mxu0 0.0
    %1184 = vmatprep.subr.mxu0 0.0
    %1185 = vmatpush1.msra.mxu0 0.0
    %1186 = vmatprep.subr.mxu0 0.0
    %1187 = vmatpush1.msra.mxu0 0.0
    %1188 = vmatprep.subr.mxu0 0.0
    %1189 = vmatpush1.msra.mxu0 0.0
    %1190 = vmatprep.subr.mxu0 0.0
    %1191 = vmatpush1.msra.mxu0 0.0
    %1192 = vmatprep.subr.mxu0 0.0
    %1193 = vmatpush1.msra.mxu0 0.0
    %1194 = vmatprep.subr.mxu0 0.0
    %1195 = vmatpush1.msra.mxu0 0.0
    %1196 = vmatprep.subr.mxu0 0.0
    %1197 = vmatpush1.msra.mxu0 0.0
    %1198 = vmatprep.subr.mxu0 0.0
    %1199 = vmatpush1.msra.mxu0 0.0
    %1200 = vmatprep.subr.mxu0 0.0
    %1201 = vmatpush1.msra.mxu0 0.0
    %1202 = vmatprep.subr.mxu0 0.0
    %1203 = vmatpush1.msra.mxu0 0.0
    %1204 = vmatprep.subr.mxu0 0.0
    %1205 = vmatpush1.msra.mxu0 0.0
    %1206 = vmatprep.subr.mxu0 0.0
    %1207 = vmatpush1.msra.mxu0 0.0
    %1208 = vmatprep.mubr.f32.mxu0 0.0
    %1209 = vmatmul.mubr.f32.gmra.mrb[0].mxu0 %v1136
    %v1210 = vpop.f32.mrb[0].mxu0
    %v1211 = vadd.f32 0.0, %v1210
    %v1212 = vpop.f32.mrb[0].mxu0
    %1213 = vmatprep.mubr.f32.mxu0 0.0
    %1214 = vmatmul.mubr.f32.gmra.mrb[0].mxu0 %v1139
    %v1215 = vpop.f32.mrb[0].mxu0
    %v1216 = vadd.f32 0.0, %v1215
    %v1217 = vpop.f32.mrb[0].mxu0
    %1218 = vdwg.mxu0
    %v1219 = vadd.f32 %v818, %v1211
    %v1220 = vadd.f32 %v823, %v1216
    %s1221 = sadd.s32 96, %s20
    %s1222 = scalar_lea.vmem %s0, %s1221
    %v1223 = vld [vmem:[%s1222] sm:$0x7f]
    %s1224 = sadd.s32 104, %s20
    %s1225 = scalar_lea.vmem %s0, %s1224
    %v1226 = vld [vmem:[%s1225] sm:$0x7f]
    %v1228 = vsel %vm29, %v1226, 0
    %1230 = vmatprep.subr.mxu0 0.0
    %1231 = vmatpush1.msra.mxu0 %v35
    %1232 = vmatprep.subr.mxu0 0.0
    %1233 = vmatpush1.msra.mxu0 0.0
    %1234 = vmatprep.subr.mxu0 0.0
    %1235 = vmatpush1.msra.mxu0 0.0
    %1236 = vmatprep.subr.mxu0 0.0
    %1237 = vmatpush1.msra.mxu0 0.0
    %1238 = vmatprep.subr.mxu0 0.0
    %1239 = vmatpush1.msra.mxu0 0.0
    %1240 = vmatprep.subr.mxu0 0.0
    %1241 = vmatpush1.msra.mxu0 0.0
    %1242 = vmatprep.subr.mxu0 0.0
    %1243 = vmatpush1.msra.mxu0 0.0
    %1244 = vmatprep.subr.mxu0 0.0
    %1245 = vmatpush1.msra.mxu0 0.0
    %1246 = vmatprep.subr.mxu0 0.0
    %1247 = vmatpush1.msra.mxu0 0.0
    %1248 = vmatprep.subr.mxu0 0.0
    %1249 = vmatpush1.msra.mxu0 0.0
    %1250 = vmatprep.subr.mxu0 0.0
    %1251 = vmatpush1.msra.mxu0 0.0
    %1252 = vmatprep.subr.mxu0 0.0
    %1253 = vmatpush1.msra.mxu0 0.0
    %1254 = vmatprep.subr.mxu0 0.0
    %1255 = vmatpush1.msra.mxu0 0.0
    %1256 = vmatprep.subr.mxu0 0.0
    %1257 = vmatpush1.msra.mxu0 0.0
    %1258 = vmatprep.subr.mxu0 0.0
    %1259 = vmatpush1.msra.mxu0 0.0
    %1260 = vmatprep.subr.mxu0 0.0
    %1261 = vmatpush1.msra.mxu0 0.0
    %1262 = vmatprep.subr.mxu0 0.0
    %1263 = vmatpush1.msra.mxu0 0.0
    %1264 = vmatprep.subr.mxu0 0.0
    %1265 = vmatpush1.msra.mxu0 0.0
    %1266 = vmatprep.subr.mxu0 0.0
    %1267 = vmatpush1.msra.mxu0 0.0
    %1268 = vmatprep.subr.mxu0 0.0
    %1269 = vmatpush1.msra.mxu0 0.0
    %1270 = vmatprep.subr.mxu0 0.0
    %1271 = vmatpush1.msra.mxu0 0.0
    %1272 = vmatprep.subr.mxu0 0.0
    %1273 = vmatpush1.msra.mxu0 0.0
    %1274 = vmatprep.subr.mxu0 0.0
    %1275 = vmatpush1.msra.mxu0 0.0
    %1276 = vmatprep.subr.mxu0 0.0
    %1277 = vmatpush1.msra.mxu0 0.0
    %1278 = vmatprep.subr.mxu0 0.0
    %1279 = vmatpush1.msra.mxu0 0.0
    %1280 = vmatprep.subr.mxu0 0.0
    %1281 = vmatpush1.msra.mxu0 0.0
    %1282 = vmatprep.subr.mxu0 0.0
    %1283 = vmatpush1.msra.mxu0 0.0
    %1284 = vmatprep.subr.mxu0 0.0
    %1285 = vmatpush1.msra.mxu0 0.0
    %1286 = vmatprep.subr.mxu0 0.0
    %1287 = vmatpush1.msra.mxu0 0.0
    %1288 = vmatprep.subr.mxu0 0.0
    %1289 = vmatpush1.msra.mxu0 0.0
    %1290 = vmatprep.subr.mxu0 0.0
    %1291 = vmatpush1.msra.mxu0 0.0
    %1292 = vmatprep.subr.mxu0 0.0
    %1293 = vmatpush1.msra.mxu0 0.0
    %1294 = vmatprep.mubr.f32.mxu0 0.0
    %1295 = vmatmul.mubr.f32.gmra.mrb[0].mxu0 %v1228
    %v1296 = vpop.f32.mrb[0].mxu0
    %v1297 = vadd.f32 0.0, %v1296
    %v1298 = vpop.f32.mrb[0].mxu0
    %1299 = vdwg.mxu0
    %v1301 = vsel %vm29, %v1223, 0
    %1303 = vmatprep.subr.mxu0 0.0
    %1304 = vmatpush1.msra.mxu0 %v111
    %1305 = vmatprep.subr.mxu0 0.0
    %1306 = vmatpush1.msra.mxu0 0.0
    %1307 = vmatprep.subr.mxu0 0.0
    %1308 = vmatpush1.msra.mxu0 0.0
    %1309 = vmatprep.subr.mxu0 0.0
    %1310 = vmatpush1.msra.mxu0 0.0
    %1311 = vmatprep.subr.mxu0 0.0
    %1312 = vmatpush1.msra.mxu0 0.0
    %1313 = vmatprep.subr.mxu0 0.0
    %1314 = vmatpush1.msra.mxu0 0.0
    %1315 = vmatprep.subr.mxu0 0.0
    %1316 = vmatpush1.msra.mxu0 0.0
    %1317 = vmatprep.subr.mxu0 0.0
    %1318 = vmatpush1.msra.mxu0 0.0
    %1319 = vmatprep.subr.mxu0 0.0
    %1320 = vmatpush1.msra.mxu0 0.0
    %1321 = vmatprep.subr.mxu0 0.0
    %1322 = vmatpush1.msra.mxu0 0.0
    %1323 = vmatprep.subr.mxu0 0.0
    %1324 = vmatpush1.msra.mxu0 0.0
    %1325 = vmatprep.subr.mxu0 0.0
    %1326 = vmatpush1.msra.mxu0 0.0
    %1327 = vmatprep.subr.mxu0 0.0
    %1328 = vmatpush1.msra.mxu0 0.0
    %1329 = vmatprep.subr.mxu0 0.0
    %1330 = vmatpush1.msra.mxu0 0.0
    %1331 = vmatprep.subr.mxu0 0.0
    %1332 = vmatpush1.msra.mxu0 0.0
    %1333 = vmatprep.subr.mxu0 0.0
    %1334 = vmatpush1.msra.mxu0 0.0
    %1335 = vmatprep.subr.mxu0 0.0
    %1336 = vmatpush1.msra.mxu0 0.0
    %1337 = vmatprep.subr.mxu0 0.0
    %1338 = vmatpush1.msra.mxu0 0.0
    %1339 = vmatprep.subr.mxu0 0.0
    %1340 = vmatpush1.msra.mxu0 0.0
    %1341 = vmatprep.subr.mxu0 0.0
    %1342 = vmatpush1.msra.mxu0 0.0
    %1343 = vmatprep.subr.mxu0 0.0
    %1344 = vmatpush1.msra.mxu0 0.0
    %1345 = vmatprep.subr.mxu0 0.0
    %1346 = vmatpush1.msra.mxu0 0.0
    %1347 = vmatprep.subr.mxu0 0.0
    %1348 = vmatpush1.msra.mxu0 0.0
    %1349 = vmatprep.subr.mxu0 0.0
    %1350 = vmatpush1.msra.mxu0 0.0
    %1351 = vmatprep.subr.mxu0 0.0
    %1352 = vmatpush1.msra.mxu0 0.0
    %1353 = vmatprep.subr.mxu0 0.0
    %1354 = vmatpush1.msra.mxu0 0.0
    %1355 = vmatprep.subr.mxu0 0.0
    %1356 = vmatpush1.msra.mxu0 0.0
    %1357 = vmatprep.subr.mxu0 0.0
    %1358 = vmatpush1.msra.mxu0 0.0
    %1359 = vmatprep.subr.mxu0 0.0
    %1360 = vmatpush1.msra.mxu0 0.0
    %1361 = vmatprep.subr.mxu0 0.0
    %1362 = vmatpush1.msra.mxu0 0.0
    %1363 = vmatprep.subr.mxu0 0.0
    %1364 = vmatpush1.msra.mxu0 0.0
    %1365 = vmatprep.subr.mxu0 0.0
    %1366 = vmatpush1.msra.mxu0 0.0
    %1367 = vmatprep.mubr.f32.mxu0 0.0
    %1368 = vmatmul.mubr.f32.gmra.mrb[0].mxu0 %v1301
    %v1369 = vpop.f32.mrb[0].mxu0
    %v1370 = vadd.f32 %v1297, %v1369
    %v1371 = vpop.f32.mrb[0].mxu0
    %1372 = vdwg.mxu0
    %s1373 = sadd.s32 112, %s20
    %s1374 = scalar_lea.vmem %s0, %s1373
    %v1375 = vld [vmem:[%s1374] sm:$0x7f]
    %v1377 = vsel %vm29, %v1375, 0
    %1379 = vmatprep.subr.mxu0 0.0
    %1380 = vmatpush1.msra.mxu0 %v192
    %1381 = vmatprep.subr.mxu0 0.0
    %1382 = vmatpush1.msra.mxu0 0.0
    %1383 = vmatprep.subr.mxu0 0.0
    %1384 = vmatpush1.msra.mxu0 0.0
    %1385 = vmatprep.subr.mxu0 0.0
    %1386 = vmatpush1.msra.mxu0 0.0
    %1387 = vmatprep.subr.mxu0 0.0
    %1388 = vmatpush1.msra.mxu0 0.0
    %1389 = vmatprep.subr.mxu0 0.0
    %1390 = vmatpush1.msra.mxu0 0.0
    %1391 = vmatprep.subr.mxu0 0.0
    %1392 = vmatpush1.msra.mxu0 0.0
    %1393 = vmatprep.subr.mxu0 0.0
    %1394 = vmatpush1.msra.mxu0 0.0
    %1395 = vmatprep.subr.mxu0 0.0
    %1396 = vmatpush1.msra.mxu0 0.0
    %1397 = vmatprep.subr.mxu0 0.0
    %1398 = vmatpush1.msra.mxu0 0.0
    %1399 = vmatprep.subr.mxu0 0.0
    %1400 = vmatpush1.msra.mxu0 0.0
    %1401 = vmatprep.subr.mxu0 0.0
    %1402 = vmatpush1.msra.mxu0 0.0
    %1403 = vmatprep.subr.mxu0 0.0
    %1404 = vmatpush1.msra.mxu0 0.0
    %1405 = vmatprep.subr.mxu0 0.0
    %1406 = vmatpush1.msra.mxu0 0.0
    %1407 = vmatprep.subr.mxu0 0.0
    %1408 = vmatpush1.msra.mxu0 0.0
    %1409 = vmatprep.subr.mxu0 0.0
    %1410 = vmatpush1.msra.mxu0 0.0
    %1411 = vmatprep.subr.mxu0 0.0
    %1412 = vmatpush1.msra.mxu0 0.0
    %1413 = vmatprep.subr.mxu0 0.0
    %1414 = vmatpush1.msra.mxu0 0.0
    %1415 = vmatprep.subr.mxu0 0.0
    %1416 = vmatpush1.msra.mxu0 0.0
    %1417 = vmatprep.subr.mxu0 0.0
    %1418 = vmatpush1.msra.mxu0 0.0
    %1419 = vmatprep.subr.mxu0 0.0
    %1420 = vmatpush1.msra.mxu0 0.0
    %1421 = vmatprep.subr.mxu0 0.0
    %1422 = vmatpush1.msra.mxu0 0.0
    %1423 = vmatprep.subr.mxu0 0.0
    %1424 = vmatpush1.msra.mxu0 0.0
    %1425 = vmatprep.subr.mxu0 0.0
    %1426 = vmatpush1.msra.mxu0 0.0
    %1427 = vmatprep.subr.mxu0 0.0
    %1428 = vmatpush1.msra.mxu0 0.0
    %1429 = vmatprep.subr.mxu0 0.0
    %1430 = vmatpush1.msra.mxu0 0.0
    %1431 = vmatprep.subr.mxu0 0.0
    %1432 = vmatpush1.msra.mxu0 0.0
    %1433 = vmatprep.subr.mxu0 0.0
    %1434 = vmatpush1.msra.mxu0 0.0
    %1435 = vmatprep.subr.mxu0 0.0
    %1436 = vmatpush1.msra.mxu0 0.0
    %1437 = vmatprep.subr.mxu0 0.0
    %1438 = vmatpush1.msra.mxu0 0.0
    %1439 = vmatprep.subr.mxu0 0.0
    %1440 = vmatpush1.msra.mxu0 0.0
    %1441 = vmatprep.subr.mxu0 0.0
    %1442 = vmatpush1.msra.mxu0 0.0
    %1443 = vmatprep.mubr.f32.mxu0 0.0
    %1444 = vmatmul.mubr.f32.gmra.mrb[0].mxu0 %v1377
    %v1445 = vpop.f32.mrb[0].mxu0
    %v1446 = vadd.f32 0.0, %v1445
    %v1447 = vpop.f32.mrb[0].mxu0
    %1448 = vdwg.mxu0
    %v1449 = vadd.f32 %v1370, %v1446
    %s1450 = sadd.s32 120, %s20
    %s1451 = scalar_lea.vmem %s0, %s1450
    %v1452 = vld [vmem:[%s1451] sm:$0x7f]
    %v1454 = vsel %vm29, %v1452, 0
    %1456 = vmatprep.subr.mxu0 0.0
    %1457 = vmatpush1.msra.mxu0 %v274
    %1458 = vmatprep.subr.mxu0 0.0
    %1459 = vmatpush1.msra.mxu0 0.0
    %1460 = vmatprep.subr.mxu0 0.0
    %1461 = vmatpush1.msra.mxu0 0.0
    %1462 = vmatprep.subr.mxu0 0.0
    %1463 = vmatpush1.msra.mxu0 0.0
    %1464 = vmatprep.subr.mxu0 0.0
    %1465 = vmatpush1.msra.mxu0 0.0
    %1466 = vmatprep.subr.mxu0 0.0
    %1467 = vmatpush1.msra.mxu0 0.0
    %1468 = vmatprep.subr.mxu0 0.0
    %1469 = vmatpush1.msra.mxu0 0.0
    %1470 = vmatprep.subr.mxu0 0.0
    %1471 = vmatpush1.msra.mxu0 0.0
    %1472 = vmatprep.subr.mxu0 0.0
    %1473 = vmatpush1.msra.mxu0 0.0
    %1474 = vmatprep.subr.mxu0 0.0
    %1475 = vmatpush1.msra.mxu0 0.0
    %1476 = vmatprep.subr.mxu0 0.0
    %1477 = vmatpush1.msra.mxu0 0.0
    %1478 = vmatprep.subr.mxu0 0.0
    %1479 = vmatpush1.msra.mxu0 0.0
    %1480 = vmatprep.subr.mxu0 0.0
    %1481 = vmatpush1.msra.mxu0 0.0
    %1482 = vmatprep.subr.mxu0 0.0
    %1483 = vmatpush1.msra.mxu0 0.0
    %1484 = vmatprep.subr.mxu0 0.0
    %1485 = vmatpush1.msra.mxu0 0.0
    %1486 = vmatprep.subr.mxu0 0.0
    %1487 = vmatpush1.msra.mxu0 0.0
    %1488 = vmatprep.subr.mxu0 0.0
    %1489 = vmatpush1.msra.mxu0 0.0
    %1490 = vmatprep.subr.mxu0 0.0
    %1491 = vmatpush1.msra.mxu0 0.0
    %1492 = vmatprep.subr.mxu0 0.0
    %1493 = vmatpush1.msra.mxu0 0.0
    %1494 = vmatprep.subr.mxu0 0.0
    %1495 = vmatpush1.msra.mxu0 0.0
    %1496 = vmatprep.subr.mxu0 0.0
    %1497 = vmatpush1.msra.mxu0 0.0
    %1498 = vmatprep.subr.mxu0 0.0
    %1499 = vmatpush1.msra.mxu0 0.0
    %1500 = vmatprep.subr.mxu0 0.0
    %1501 = vmatpush1.msra.mxu0 0.0
    %1502 = vmatprep.subr.mxu0 0.0
    %1503 = vmatpush1.msra.mxu0 0.0
    %1504 = vmatprep.subr.mxu0 0.0
    %1505 = vmatpush1.msra.mxu0 0.0
    %1506 = vmatprep.subr.mxu0 0.0
    %1507 = vmatpush1.msra.mxu0 0.0
    %1508 = vmatprep.subr.mxu0 0.0
    %1509 = vmatpush1.msra.mxu0 0.0
    %1510 = vmatprep.subr.mxu0 0.0
    %1511 = vmatpush1.msra.mxu0 0.0
    %1512 = vmatprep.subr.mxu0 0.0
    %1513 = vmatpush1.msra.mxu0 0.0
    %1514 = vmatprep.subr.mxu0 0.0
    %1515 = vmatpush1.msra.mxu0 0.0
    %1516 = vmatprep.subr.mxu0 0.0
    %1517 = vmatpush1.msra.mxu0 0.0
    %1518 = vmatprep.subr.mxu0 0.0
    %1519 = vmatpush1.msra.mxu0 0.0
    %1520 = vmatprep.mubr.f32.mxu0 0.0
    %1521 = vmatmul.mubr.f32.gmra.mrb[0].mxu0 %v1454
    %v1522 = vpop.f32.mrb[0].mxu0
    %v1523 = vadd.f32 0.0, %v1522
    %v1524 = vpop.f32.mrb[0].mxu0
    %1525 = vdwg.mxu0
    %v1526 = vadd.f32 %v1449, %v1523
    %s1527 = scalar_lea.vmem %s1, 48
    %v1528 = vld [vmem:[%s1527] sm:$0xff]
    %v1529 = vld [vmem:[%s1527 + $0x8] sm:$0x3f]
    %v1531 = vsel %vm29, %v1528, 0
    %v1534 = vsel %vm29, %v1529, 0
    %v1537 = vsel %vm33, %v1526, 0
    %1539 = vmatprep.subr.mxu0 0.0
    %1540 = vmatpush1.msra.mxu0 %v1537
    %1541 = vmatprep.subr.mxu0 0.0
    %1542 = vmatpush1.msra.mxu0 0.0
    %1543 = vmatprep.subr.mxu0 0.0
    %1544 = vmatpush1.msra.mxu0 0.0
    %1545 = vmatprep.subr.mxu0 0.0
    %1546 = vmatpush1.msra.mxu0 0.0
    %1547 = vmatprep.subr.mxu0 0.0
    %1548 = vmatpush1.msra.mxu0 0.0
    %1549 = vmatprep.subr.mxu0 0.0
    %1550 = vmatpush1.msra.mxu0 0.0
    %1551 = vmatprep.subr.mxu0 0.0
    %1552 = vmatpush1.msra.mxu0 0.0
    %1553 = vmatprep.subr.mxu0 0.0
    %1554 = vmatpush1.msra.mxu0 0.0
    %1555 = vmatprep.subr.mxu0 0.0
    %1556 = vmatpush1.msra.mxu0 0.0
    %1557 = vmatprep.subr.mxu0 0.0
    %1558 = vmatpush1.msra.mxu0 0.0
    %1559 = vmatprep.subr.mxu0 0.0
    %1560 = vmatpush1.msra.mxu0 0.0
    %1561 = vmatprep.subr.mxu0 0.0
    %1562 = vmatpush1.msra.mxu0 0.0
    %1563 = vmatprep.subr.mxu0 0.0
    %1564 = vmatpush1.msra.mxu0 0.0
    %1565 = vmatprep.subr.mxu0 0.0
    %1566 = vmatpush1.msra.mxu0 0.0
    %1567 = vmatprep.subr.mxu0 0.0
    %1568 = vmatpush1.msra.mxu0 0.0
    %1569 = vmatprep.subr.mxu0 0.0
    %1570 = vmatpush1.msra.mxu0 0.0
    %1571 = vmatprep.subr.mxu0 0.0
    %1572 = vmatpush1.msra.mxu0 0.0
    %1573 = vmatprep.subr.mxu0 0.0
    %1574 = vmatpush1.msra.mxu0 0.0
    %1575 = vmatprep.subr.mxu0 0.0
    %1576 = vmatpush1.msra.mxu0 0.0
    %1577 = vmatprep.subr.mxu0 0.0
    %1578 = vmatpush1.msra.mxu0 0.0
    %1579 = vmatprep.subr.mxu0 0.0
    %1580 = vmatpush1.msra.mxu0 0.0
    %1581 = vmatprep.subr.mxu0 0.0
    %1582 = vmatpush1.msra.mxu0 0.0
    %1583 = vmatprep.subr.mxu0 0.0
    %1584 = vmatpush1.msra.mxu0 0.0
    %1585 = vmatprep.subr.mxu0 0.0
    %1586 = vmatpush1.msra.mxu0 0.0
    %1587 = vmatprep.subr.mxu0 0.0
    %1588 = vmatpush1.msra.mxu0 0.0
    %1589 = vmatprep.subr.mxu0 0.0
    %1590 = vmatpush1.msra.mxu0 0.0
    %1591 = vmatprep.subr.mxu0 0.0
    %1592 = vmatpush1.msra.mxu0 0.0
    %1593 = vmatprep.subr.mxu0 0.0
    %1594 = vmatpush1.msra.mxu0 0.0
    %1595 = vmatprep.subr.mxu0 0.0
    %1596 = vmatpush1.msra.mxu0 0.0
    %1597 = vmatprep.subr.mxu0 0.0
    %1598 = vmatpush1.msra.mxu0 0.0
    %1599 = vmatprep.subr.mxu0 0.0
    %1600 = vmatpush1.msra.mxu0 0.0
    %1601 = vmatprep.subr.mxu0 0.0
    %1602 = vmatpush1.msra.mxu0 0.0
    %1603 = vmatprep.mubr.f32.mxu0 0.0
    %1604 = vmatmul.mubr.f32.gmra.mrb[0].mxu0 %v1531
    %v1605 = vpop.f32.mrb[0].mxu0
    %v1606 = vadd.f32 0.0, %v1605
    %v1607 = vpop.f32.mrb[0].mxu0
    %1608 = vmatprep.mubr.f32.mxu0 0.0
    %1609 = vmatmul.mubr.f32.gmra.mrb[0].mxu0 %v1534
    %v1610 = vpop.f32.mrb[0].mxu0
    %v1611 = vadd.f32 0.0, %v1610
    %v1612 = vpop.f32.mrb[0].mxu0
    %1613 = vdwg.mxu0
    %v1614 = vadd.f32 %v1219, %v1606
    %v1615 = vadd.f32 %v1220, %v1611
    %s1616 = smul.u32 %s15, 16
    %s1617 = scalar_lea.vmem %s3, %s1616
    %vm1618 = vcmask 113664
    %1619 = vst.msk [vmem:[%s1617] sm:$0xff] %vm1618, %v1614
    %vm1620 = vcmask 111616
    %1621 = vst.msk [vmem:[%s1617 + $0x8] sm:$0x3f] %vm1620, %v1615
  $region18: #{patch2im_pallas.1} parent=0 // loop_footer
    %s19 = sadd.s32 1, %s15
  $region19: #{patch2im_pallas.1} parent=0 // loop_footer_branch
    %14 = sbr.rel target = $region15
  $region20: #{patch2im_pallas.1} parent=0 // loop_exit
    _
  // Predicated region
  $region21: #{patch2im_pallas.1} parent=0 // pred_check
    _
  $region22: #{patch2im_pallas.1} parent=0 // pred_check_branch
    %1623 = sbr.rel (0) target = $region24
  $region23: #{patch2im_pallas.1} parent=0 // pred_region
    _
  $region24: #{patch2im_pallas.1} parent=0 // pred_fallthru
    _
  // Predicated region
  $region25: #{patch2im_pallas.1} parent=0 // pred_check
    _
  $region26: #{patch2im_pallas.1} parent=0 // pred_check_branch
    %1625 = sbr.rel (0) target = $region28
  $region27: #{patch2im_pallas.1} parent=0 // pred_region
    _
  $region28: #{patch2im_pallas.1} parent=0 // pred_fallthru
    _

</llo_original>
